<compile_context>
chip_gen: v6e
topology: v6e:2x2x1
jax: 0.10.0
libtpu: 0.0.40
codegen_flags: <defaults>
</compile_context>

<pallas_src>
import functools

import jax
import jax.numpy as jnp
from jax.experimental import pallas as pl
from jax.experimental.pallas import tpu as pltpu


def _bottleneck_kernel(x_ref, w1_ref, s1_ref, t1_ref,
                       w2_ref, s2_ref, t2_ref,
                       w3_ref, s3_ref, t3_ref,
                       o_ref, pad_ref, *, H, W, P):
    """Fused Bottleneck forward for one batch element (grid axis 0 = batch)."""
    cin = x_ref.shape[-1]
    cout = w3_ref.shape[-1]

    x = x_ref[0]                                    # (H, W, Cin)  f32
    x2d = x.reshape(H * W, cin)                     # residual path (f32)

    # ---- conv1 (1x1) + BN1 + ReLU ------------------------------------------
    y1 = jnp.dot(x2d.astype(jnp.bfloat16), w1_ref[...],
                 preferred_element_type=jnp.float32)
    y1 = jnp.maximum(y1 * s1_ref[...] + t1_ref[...], 0.0)       # (H*W, P) f32

    # ---- stage into zero-padded VMEM scratch for the 3x3 conv ---------------
    pad_ref[...] = jnp.zeros_like(pad_ref)
    pad_ref[1:H + 1, 1:W + 1, :] = y1.reshape(H, W, P)

    # ---- conv2 (3x3, stride 1, pad 1) + BN2 + ReLU ---------------------------
    acc = jnp.zeros((H * W, P), jnp.float32)
    for dy in range(3):
        for dx in range(3):
            tap = pad_ref[dy:dy + H, dx:dx + W, :].reshape(H * W, P)
            acc = acc + jnp.dot(tap.astype(jnp.bfloat16),
                                w2_ref[dy, dx, :, :],
                                preferred_element_type=jnp.float32)
    y2 = jnp.maximum(acc * s2_ref[...] + t2_ref[...], 0.0)      # (H*W, P) f32

    # ---- conv3 (1x1) + BN3 ---------------------------------------------------
    y3 = jnp.dot(y2.astype(jnp.bfloat16), w3_ref[...],
                 preferred_element_type=jnp.float32)
    y3 = y3 * s3_ref[...] + t3_ref[...]                         # (H*W, 4P) f32

    # ---- residual add + final ReLU -------------------------------------------
    out = jnp.maximum(y3 + x2d, 0.0)
    o_ref[0] = out.reshape(H, W, cout).astype(o_ref.dtype)


def bottleneck_forward(x_nchw, params):
    """x_nchw: (B, inplanes, H, W) f32; identity residual (downsample=None)."""
    w1, s1, t1 = params["w1"], params["s1"], params["t1"]
    w2, s2, t2 = params["w2"], params["s2"], params["t2"]
    w3, s3, t3 = params["w3"], params["s3"], params["t3"]

    B, Cin, H, W = x_nchw.shape
    P = w1.shape[1]
    Cout = w3.shape[1]
    assert Cout == Cin, "identity residual requires inplanes == planes * 4"

    # NCHW -> NHWC (channels on the lane axis).
    x_nhwc = jnp.transpose(x_nchw, (0, 2, 3, 1)).astype(jnp.float32)

    kernel = functools.partial(_bottleneck_kernel, H=H, W=W, P=P)

    def full(a):
        # Whole-array VMEM block, constant block index across the batch grid
        # (Pallas keeps it resident; no re-DMA per grid step).
        return pl.BlockSpec(a.shape, lambda b, _nd=a.ndim: (0,) * _nd)

    out_nhwc = pl.pallas_call(
        kernel,
        out_shape=jax.ShapeDtypeStruct((B, H, W, Cout), jnp.float32),
        grid_spec=pltpu.PrefetchScalarGridSpec(
            num_scalar_prefetch=0,
            grid=(B,),
            in_specs=[
                pl.BlockSpec((1, H, W, Cin), lambda b: (b, 0, 0, 0)),
                full(w1), full(s1), full(t1),
                full(w2), full(s2), full(t2),
                full(w3), full(s3), full(t3),
            ],
            out_specs=pl.BlockSpec((1, H, W, Cout), lambda b: (b, 0, 0, 0)),
            scratch_shapes=[pltpu.VMEM((H + 2, W + 2, P), jnp.float32)],
        ),
        compiler_params=pltpu.CompilerParams(
            dimension_semantics=("parallel",)),
    )(x_nhwc, w1, s1, t1, w2, s2, t2, w3, s3, t3)

    return jnp.transpose(out_nhwc, (0, 3, 1, 2))


def init_bottleneck_params(key, inplanes, planes, eps=1e-5):
    """Matmul-ready, BN-folded Bottleneck parameters (eval-mode BatchNorm).

      w1: (inplanes, planes)         bf16  -- conv1 1x1 (PyTorch weight[..,0,0].T)
      w2: (3, 3, planes, planes)     bf16  -- conv2 3x3, HWIO
      w3: (planes, 4*planes)         bf16  -- conv3 1x1
      sN/tN: (1, C) f32 per-channel scale/shift from folded BatchNorm.
    """
    expansion = 4
    keys = jax.random.split(key, 6)

    def conv_uniform(k, shape, fan_in):
        bound = 1.0 / (fan_in ** 0.5)
        return jax.random.uniform(k, shape, jnp.float32, -bound, bound)

    def folded_bn(k, c):
        kg, kb, km, kv = jax.random.split(k, 4)
        gamma = jax.random.uniform(kg, (c,), jnp.float32, 0.5, 1.5)
        beta = jax.random.uniform(kb, (c,), jnp.float32, -0.2, 0.2)
        mean = jax.random.uniform(km, (c,), jnp.float32, -0.2, 0.2)
        var = jax.random.uniform(kv, (c,), jnp.float32, 0.5, 1.5)
        scale = gamma / jnp.sqrt(var + eps)
        shift = beta - mean * scale
        return scale.reshape(1, c), shift.reshape(1, c)

    w1 = conv_uniform(keys[0], (inplanes, planes), inplanes).astype(jnp.bfloat16)
    w2 = conv_uniform(keys[1], (3, 3, planes, planes), planes * 9).astype(jnp.bfloat16)
    w3 = conv_uniform(keys[2], (planes, planes * expansion), planes).astype(jnp.bfloat16)
    s1, t1 = folded_bn(keys[3], planes)
    s2, t2 = folded_bn(keys[4], planes)
    s3, t3 = folded_bn(keys[5], planes * expansion)
    return dict(w1=w1, s1=s1, t1=t1, w2=w2, s2=s2, t2=t2, w3=w3, s3=s3, t3=t3)


def bottleneck_reference(x_nchw, params):
    """Pure-JAX reference replicating the kernel's math (bf16 MXU operands)."""
    b16 = lambda a: a.astype(jnp.bfloat16)
    w1, s1, t1 = params["w1"], params["s1"], params["t1"]
    w2, s2, t2 = params["w2"], params["s2"], params["t2"]
    w3, s3, t3 = params["w3"], params["s3"], params["t3"]
    B, Cin, H, W = x_nchw.shape
    P = w1.shape[1]

    x = jnp.transpose(x_nchw, (0, 2, 3, 1)).astype(jnp.float32)   # NHWC
    x2d = x.reshape(B * H * W, Cin)

    y1 = jnp.dot(b16(x2d), b16(w1), preferred_element_type=jnp.float32)
    y1 = jnp.maximum(y1 * s1 + t1, 0.0).reshape(B, H, W, P)

    ypad = jnp.pad(y1, ((0, 0), (1, 1), (1, 1), (0, 0)))
    acc = jnp.zeros((B * H * W, P), jnp.float32)
    for dy in range(3):
        for dx in range(3):
            tap = ypad[:, dy:dy + H, dx:dx + W, :].reshape(B * H * W, P)
            acc = acc + jnp.dot(b16(tap), b16(w2[dy, dx]),
                                preferred_element_type=jnp.float32)
    y2 = jnp.maximum(acc * s2 + t2, 0.0)

    y3 = jnp.dot(b16(y2), b16(w3), preferred_element_type=jnp.float32)
    y3 = y3 * s3 + t3

    out = jnp.maximum(y3 + x2d, 0.0).reshape(B, H, W, Cin)
    return jnp.transpose(out, (0, 3, 1, 2))


if __name__ == "__main__":
    key = jax.random.PRNGKey(0)
    k_in, k_par = jax.random.split(key)

    # Small shapes: batch=2, planes=32 -> inplanes = out-channels = 128 (lane-dense),
    # spatial 8x8.  Default Bottleneck config: stride=1, downsample=None.
    B, planes, H, W = 2, 32, 8, 8
    inplanes = planes * 4

    x = jax.random.normal(k_in, (B, inplanes, H, W), dtype=jnp.float32)
    params = init_bottleneck_params(k_par, inplanes, planes)

    out = bottleneck_forward(x, params)
    out = jax.block_until_ready(out)

    ref = bottleneck_reference(x, params)
    assert out.shape == (B, inplanes, H, W)
    assert jnp.allclose(out, ref, atol=1e-2, rtol=1e-2), (
        "mismatch vs reference, max abs err = "
        + str(float(jnp.max(jnp.abs(out - ref)))))

    print("KERNEL_OK")
</pallas_src>

<mosaic_0001>
module attributes {stable_mosaic.version = 11 : i64} {
  func.func @_bottleneck_kernel(%arg0: i32, %arg1: memref<1x8x8x128xf32, #tpu.memory_space<vmem>>, %arg2: memref<128x32xbf16, #tpu.memory_space<vmem>>, %arg3: memref<1x32xf32, #tpu.memory_space<vmem>>, %arg4: memref<1x32xf32, #tpu.memory_space<vmem>>, %arg5: memref<3x3x32x32xbf16, #tpu.memory_space<vmem>>, %arg6: memref<1x32xf32, #tpu.memory_space<vmem>>, %arg7: memref<1x32xf32, #tpu.memory_space<vmem>>, %arg8: memref<32x128xbf16, #tpu.memory_space<vmem>>, %arg9: memref<1x128xf32, #tpu.memory_space<vmem>>, %arg10: memref<1x128xf32, #tpu.memory_space<vmem>>, %arg11: memref<1x8x8x128xf32, #tpu.memory_space<vmem>>, %arg12: memref<10x10x32xf32, #tpu.memory_space<vmem>>) attributes {dimension_semantics = [#tpu.dimension_semantics<parallel>], iteration_bounds = array<i64: 2>, scalar_prefetch = 0 : i64, scratch_operands = 1 : i64, tpu.core_type = #tpu.core_type<tc>, window_params = [{transform_indices = @transform_0, window_bounds = array<i64: 1, 8, 8, 128>}, {pipeline_mode = #tpu.pipeline_mode<synchronous>, transform_indices = @transform_1, window_bounds = array<i64: 128, 32>}, {pipeline_mode = #tpu.pipeline_mode<synchronous>, transform_indices = @transform_2, window_bounds = array<i64: 1, 32>}, {pipeline_mode = #tpu.pipeline_mode<synchronous>, transform_indices = @transform_3, window_bounds = array<i64: 1, 32>}, {pipeline_mode = #tpu.pipeline_mode<synchronous>, transform_indices = @transform_4, window_bounds = array<i64: 3, 3, 32, 32>}, {pipeline_mode = #tpu.pipeline_mode<synchronous>, transform_indices = @transform_5, window_bounds = array<i64: 1, 32>}, {pipeline_mode = #tpu.pipeline_mode<synchronous>, transform_indices = @transform_6, window_bounds = array<i64: 1, 32>}, {pipeline_mode = #tpu.pipeline_mode<synchronous>, transform_indices = @transform_7, window_bounds = array<i64: 32, 128>}, {pipeline_mode = #tpu.pipeline_mode<synchronous>, transform_indices = @transform_8, window_bounds = array<i64: 1, 128>}, {pipeline_mode = #tpu.pipeline_mode<synchronous>, transform_indices = @transform_9, window_bounds = array<i64: 1, 128>}, {transform_indices = @transform_10, window_bounds = array<i64: 1, 8, 8, 128>}]} {
    %c0 = arith.constant 0 : index
    %c0_0 = arith.constant 0 : index
    %c0_1 = arith.constant 0 : index
    %c0_2 = arith.constant 0 : index
    %0 = vector.load %arg1[%c0, %c0_0, %c0_1, %c0_2] : memref<1x8x8x128xf32, #tpu.memory_space<vmem>>, vector<1x8x8x128xf32>
    %1 = vector.shape_cast %0 : vector<1x8x8x128xf32> to vector<8x8x128xf32>
    %2 = vector.shape_cast %1 : vector<8x8x128xf32> to vector<64x128xf32>
    %3 = arith.truncf %2 : vector<64x128xf32> to vector<64x128xbf16>
    %c0_3 = arith.constant 0 : index
    %c0_4 = arith.constant 0 : index
    %4 = vector.load %arg2[%c0_3, %c0_4] : memref<128x32xbf16, #tpu.memory_space<vmem>>, vector<128x32xbf16>
    %cst = arith.constant dense<0.000000e+00> : vector<64x32xf32>
    %5 = tpu.matmul %3, %4, %cst {dimension_numbers = #tpu.dot_dimension_numbers<[1], [0], [0], [1], [0, 0, 1, 1], [], []>} : vector<64x128xbf16>, vector<128x32xbf16>, vector<64x32xf32> -> vector<64x32xf32>
    %c0_5 = arith.constant 0 : index
    %c0_6 = arith.constant 0 : index
    %6 = vector.load %arg3[%c0_5, %c0_6] : memref<1x32xf32, #tpu.memory_space<vmem>>, vector<1x32xf32>
    %7 = vector.broadcast %6 : vector<1x32xf32> to vector<64x32xf32>
    %8 = arith.mulf %5, %7 : vector<64x32xf32>
    %c0_7 = arith.constant 0 : index
    %c0_8 = arith.constant 0 : index
    %9 = vector.load %arg4[%c0_7, %c0_8] : memref<1x32xf32, #tpu.memory_space<vmem>>, vector<1x32xf32>
    %10 = vector.broadcast %9 : vector<1x32xf32> to vector<64x32xf32>
    %11 = arith.addf %8, %10 : vector<64x32xf32>
    %cst_9 = arith.constant 0.000000e+00 : f32
    %12 = vector.broadcast %cst_9 : f32 to vector<64x32xf32>
    %13 = arith.maximumf %11, %12 : vector<64x32xf32>
    %cst_10 = arith.constant 0.000000e+00 : f32
    %14 = vector.broadcast %cst_10 : f32 to vector<10x10x32xf32>
    %c0_11 = arith.constant 0 : index
    %c0_12 = arith.constant 0 : index
    %c0_13 = arith.constant 0 : index
    %15 = vector.load %arg12[%c0_11, %c0_12, %c0_13] : memref<10x10x32xf32, #tpu.memory_space<vmem>>, vector<10x10x32xf32>
    tpu.vector_store %arg12[%c0_11, %c0_12, %c0_13], %14 {strides = array<i32>} : memref<10x10x32xf32, #tpu.memory_space<vmem>>, vector<10x10x32xf32>,
    %16 = vector.shape_cast %13 : vector<64x32xf32> to vector<8x8x32xf32>
    %c1 = arith.constant 1 : index
    %c1_14 = arith.constant 1 : index
    %c0_15 = arith.constant 0 : index
    %17 = vector.load %arg12[%c1, %c1_14, %c0_15] : memref<10x10x32xf32, #tpu.memory_space<vmem>>, vector<8x8x32xf32>
    tpu.vector_store %arg12[%c1, %c1_14, %c0_15], %16 {strides = array<i32>} : memref<10x10x32xf32, #tpu.memory_space<vmem>>, vector<8x8x32xf32>,
    %cst_16 = arith.constant 0.000000e+00 : f32
    %18 = vector.broadcast %cst_16 : f32 to vector<64x32xf32>
    %c0_17 = arith.constant 0 : index
    %c0_18 = arith.constant 0 : index
    %c0_19 = arith.constant 0 : index
    %19 = vector.load %arg12[%c0_17, %c0_18, %c0_19] : memref<10x10x32xf32, #tpu.memory_space<vmem>>, vector<8x8x32xf32>
    %20 = vector.shape_cast %19 : vector<8x8x32xf32> to vector<64x32xf32>
    %21 = arith.truncf %20 : vector<64x32xf32> to vector<64x32xbf16>
    %c0_20 = arith.constant 0 : index
    %c0_21 = arith.constant 0 : index
    %c0_22 = arith.constant 0 : index
    %c0_23 = arith.constant 0 : index
    %22 = vector.load %arg5[%c0_20, %c0_21, %c0_22, %c0_23] : memref<3x3x32x32xbf16, #tpu.memory_space<vmem>>, vector<1x1x32x32xbf16>
    %23 = vector.shape_cast %22 : vector<1x1x32x32xbf16> to vector<32x32xbf16>
    %cst_24 = arith.constant dense<0.000000e+00> : vector<64x32xf32>
    %24 = tpu.matmul %21, %23, %cst_24 {dimension_numbers = #tpu.dot_dimension_numbers<[1], [0], [0], [1], [0, 0, 1, 1], [], []>} : vector<64x32xbf16>, vector<32x32xbf16>, vector<64x32xf32> -> vector<64x32xf32>
    %25 = arith.addf %18, %24 : vector<64x32xf32>
    %c0_25 = arith.constant 0 : index
    %c1_26 = arith.constant 1 : index
    %c0_27 = arith.constant 0 : index
    %26 = vector.load %arg12[%c0_25, %c1_26, %c0_27] : memref<10x10x32xf32, #tpu.memory_space<vmem>>, vector<8x8x32xf32>
    %27 = vector.shape_cast %26 : vector<8x8x32xf32> to vector<64x32xf32>
    %28 = arith.truncf %27 : vector<64x32xf32> to vector<64x32xbf16>
    %c0_28 = arith.constant 0 : index
    %c1_29 = arith.constant 1 : index
    %c0_30 = arith.constant 0 : index
    %c0_31 = arith.constant 0 : index
    %29 = vector.load %arg5[%c0_28, %c1_29, %c0_30, %c0_31] : memref<3x3x32x32xbf16, #tpu.memory_space<vmem>>, vector<1x1x32x32xbf16>
    %30 = vector.shape_cast %29 : vector<1x1x32x32xbf16> to vector<32x32xbf16>
    %cst_32 = arith.constant dense<0.000000e+00> : vector<64x32xf32>
    %31 = tpu.matmul %28, %30, %cst_32 {dimension_numbers = #tpu.dot_dimension_numbers<[1], [0], [0], [1], [0, 0, 1, 1], [], []>} : vector<64x32xbf16>, vector<32x32xbf16>, vector<64x32xf32> -> vector<64x32xf32>
    %32 = arith.addf %25, %31 : vector<64x32xf32>
    %c0_33 = arith.constant 0 : index
    %c2 = arith.constant 2 : index
    %c0_34 = arith.constant 0 : index
    %33 = vector.load %arg12[%c0_33, %c2, %c0_34] : memref<10x10x32xf32, #tpu.memory_space<vmem>>, vector<8x8x32xf32>
    %34 = vector.shape_cast %33 : vector<8x8x32xf32> to vector<64x32xf32>
    %35 = arith.truncf %34 : vector<64x32xf32> to vector<64x32xbf16>
    %c0_35 = arith.constant 0 : index
    %c2_36 = arith.constant 2 : index
    %c0_37 = arith.constant 0 : index
    %c0_38 = arith.constant 0 : index
    %36 = vector.load %arg5[%c0_35, %c2_36, %c0_37, %c0_38] : memref<3x3x32x32xbf16, #tpu.memory_space<vmem>>, vector<1x1x32x32xbf16>
    %37 = vector.shape_cast %36 : vector<1x1x32x32xbf16> to vector<32x32xbf16>
    %cst_39 = arith.constant dense<0.000000e+00> : vector<64x32xf32>
    %38 = tpu.matmul %35, %37, %cst_39 {dimension_numbers = #tpu.dot_dimension_numbers<[1], [0], [0], [1], [0, 0, 1, 1], [], []>} : vector<64x32xbf16>, vector<32x32xbf16>, vector<64x32xf32> -> vector<64x32xf32>
    %39 = arith.addf %32, %38 : vector<64x32xf32>
    %c1_40 = arith.constant 1 : index
    %c0_41 = arith.constant 0 : index
    %c0_42 = arith.constant 0 : index
    %40 = vector.load %arg12[%c1_40, %c0_41, %c0_42] : memref<10x10x32xf32, #tpu.memory_space<vmem>>, vector<8x8x32xf32>
    %41 = vector.shape_cast %40 : vector<8x8x32xf32> to vector<64x32xf32>
    %42 = arith.truncf %41 : vector<64x32xf32> to vector<64x32xbf16>
    %c1_43 = arith.constant 1 : index
    %c0_44 = arith.constant 0 : index
    %c0_45 = arith.constant 0 : index
    %c0_46 = arith.constant 0 : index
    %43 = vector.load %arg5[%c1_43, %c0_44, %c0_45, %c0_46] : memref<3x3x32x32xbf16, #tpu.memory_space<vmem>>, vector<1x1x32x32xbf16>
    %44 = vector.shape_cast %43 : vector<1x1x32x32xbf16> to vector<32x32xbf16>
    %cst_47 = arith.constant dense<0.000000e+00> : vector<64x32xf32>
    %45 = tpu.matmul %42, %44, %cst_47 {dimension_numbers = #tpu.dot_dimension_numbers<[1], [0], [0], [1], [0, 0, 1, 1], [], []>} : vector<64x32xbf16>, vector<32x32xbf16>, vector<64x32xf32> -> vector<64x32xf32>
    %46 = arith.addf %39, %45 : vector<64x32xf32>
    %c1_48 = arith.constant 1 : index
    %c1_49 = arith.constant 1 : index
    %c0_50 = arith.constant 0 : index
    %47 = vector.load %arg12[%c1_48, %c1_49, %c0_50] : memref<10x10x32xf32, #tpu.memory_space<vmem>>, vector<8x8x32xf32>
    %48 = vector.shape_cast %47 : vector<8x8x32xf32> to vector<64x32xf32>
    %49 = arith.truncf %48 : vector<64x32xf32> to vector<64x32xbf16>
    %c1_51 = arith.constant 1 : index
    %c1_52 = arith.constant 1 : index
    %c0_53 = arith.constant 0 : index
    %c0_54 = arith.constant 0 : index
    %50 = vector.load %arg5[%c1_51, %c1_52, %c0_53, %c0_54] : memref<3x3x32x32xbf16, #tpu.memory_space<vmem>>, vector<1x1x32x32xbf16>
    %51 = vector.shape_cast %50 : vector<1x1x32x32xbf16> to vector<32x32xbf16>
    %cst_55 = arith.constant dense<0.000000e+00> : vector<64x32xf32>
    %52 = tpu.matmul %49, %51, %cst_55 {dimension_numbers = #tpu.dot_dimension_numbers<[1], [0], [0], [1], [0, 0, 1, 1], [], []>} : vector<64x32xbf16>, vector<32x32xbf16>, vector<64x32xf32> -> vector<64x32xf32>
    %53 = arith.addf %46, %52 : vector<64x32xf32>
    %c1_56 = arith.constant 1 : index
    %c2_57 = arith.constant 2 : index
    %c0_58 = arith.constant 0 : index
    %54 = vector.load %arg12[%c1_56, %c2_57, %c0_58] : memref<10x10x32xf32, #tpu.memory_space<vmem>>, vector<8x8x32xf32>
    %55 = vector.shape_cast %54 : vector<8x8x32xf32> to vector<64x32xf32>
    %56 = arith.truncf %55 : vector<64x32xf32> to vector<64x32xbf16>
    %c1_59 = arith.constant 1 : index
    %c2_60 = arith.constant 2 : index
    %c0_61 = arith.constant 0 : index
    %c0_62 = arith.constant 0 : index
    %57 = vector.load %arg5[%c1_59, %c2_60, %c0_61, %c0_62] : memref<3x3x32x32xbf16, #tpu.memory_space<vmem>>, vector<1x1x32x32xbf16>
    %58 = vector.shape_cast %57 : vector<1x1x32x32xbf16> to vector<32x32xbf16>
    %cst_63 = arith.constant dense<0.000000e+00> : vector<64x32xf32>
    %59 = tpu.matmul %56, %58, %cst_63 {dimension_numbers = #tpu.dot_dimension_numbers<[1], [0], [0], [1], [0, 0, 1, 1], [], []>} : vector<64x32xbf16>, vector<32x32xbf16>, vector<64x32xf32> -> vector<64x32xf32>
    %60 = arith.addf %53, %59 : vector<64x32xf32>
    %c2_64 = arith.constant 2 : index
    %c0_65 = arith.constant 0 : index
    %c0_66 = arith.constant 0 : index
    %61 = vector.load %arg12[%c2_64, %c0_65, %c0_66] : memref<10x10x32xf32, #tpu.memory_space<vmem>>, vector<8x8x32xf32>
    %62 = vector.shape_cast %61 : vector<8x8x32xf32> to vector<64x32xf32>
    %63 = arith.truncf %62 : vector<64x32xf32> to vector<64x32xbf16>
    %c2_67 = arith.constant 2 : index
    %c0_68 = arith.constant 0 : index
    %c0_69 = arith.constant 0 : index
    %c0_70 = arith.constant 0 : index
    %64 = vector.load %arg5[%c2_67, %c0_68, %c0_69, %c0_70] : memref<3x3x32x32xbf16, #tpu.memory_space<vmem>>, vector<1x1x32x32xbf16>
    %65 = vector.shape_cast %64 : vector<1x1x32x32xbf16> to vector<32x32xbf16>
    %cst_71 = arith.constant dense<0.000000e+00> : vector<64x32xf32>
    %66 = tpu.matmul %63, %65, %cst_71 {dimension_numbers = #tpu.dot_dimension_numbers<[1], [0], [0], [1], [0, 0, 1, 1], [], []>} : vector<64x32xbf16>, vector<32x32xbf16>, vector<64x32xf32> -> vector<64x32xf32>
    %67 = arith.addf %60, %66 : vector<64x32xf32>
    %c2_72 = arith.constant 2 : index
    %c1_73 = arith.constant 1 : index
    %c0_74 = arith.constant 0 : index
    %68 = vector.load %arg12[%c2_72, %c1_73, %c0_74] : memref<10x10x32xf32, #tpu.memory_space<vmem>>, vector<8x8x32xf32>
    %69 = vector.shape_cast %68 : vector<8x8x32xf32> to vector<64x32xf32>
    %70 = arith.truncf %69 : vector<64x32xf32> to vector<64x32xbf16>
    %c2_75 = arith.constant 2 : index
    %c1_76 = arith.constant 1 : index
    %c0_77 = arith.constant 0 : index
    %c0_78 = arith.constant 0 : index
    %71 = vector.load %arg5[%c2_75, %c1_76, %c0_77, %c0_78] : memref<3x3x32x32xbf16, #tpu.memory_space<vmem>>, vector<1x1x32x32xbf16>
    %72 = vector.shape_cast %71 : vector<1x1x32x32xbf16> to vector<32x32xbf16>
    %cst_79 = arith.constant dense<0.000000e+00> : vector<64x32xf32>
    %73 = tpu.matmul %70, %72, %cst_79 {dimension_numbers = #tpu.dot_dimension_numbers<[1], [0], [0], [1], [0, 0, 1, 1], [], []>} : vector<64x32xbf16>, vector<32x32xbf16>, vector<64x32xf32> -> vector<64x32xf32>
    %74 = arith.addf %67, %73 : vector<64x32xf32>
    %c2_80 = arith.constant 2 : index
    %c2_81 = arith.constant 2 : index
    %c0_82 = arith.constant 0 : index
    %75 = vector.load %arg12[%c2_80, %c2_81, %c0_82] : memref<10x10x32xf32, #tpu.memory_space<vmem>>, vector<8x8x32xf32>
    %76 = vector.shape_cast %75 : vector<8x8x32xf32> to vector<64x32xf32>
    %77 = arith.truncf %76 : vector<64x32xf32> to vector<64x32xbf16>
    %c2_83 = arith.constant 2 : index
    %c2_84 = arith.constant 2 : index
    %c0_85 = arith.constant 0 : index
    %c0_86 = arith.constant 0 : index
    %78 = vector.load %arg5[%c2_83, %c2_84, %c0_85, %c0_86] : memref<3x3x32x32xbf16, #tpu.memory_space<vmem>>, vector<1x1x32x32xbf16>
    %79 = vector.shape_cast %78 : vector<1x1x32x32xbf16> to vector<32x32xbf16>
    %cst_87 = arith.constant dense<0.000000e+00> : vector<64x32xf32>
    %80 = tpu.matmul %77, %79, %cst_87 {dimension_numbers = #tpu.dot_dimension_numbers<[1], [0], [0], [1], [0, 0, 1, 1], [], []>} : vector<64x32xbf16>, vector<32x32xbf16>, vector<64x32xf32> -> vector<64x32xf32>
    %81 = arith.addf %74, %80 : vector<64x32xf32>
    %c0_88 = arith.constant 0 : index
    %c0_89 = arith.constant 0 : index
    %82 = vector.load %arg6[%c0_88, %c0_89] : memref<1x32xf32, #tpu.memory_space<vmem>>, vector<1x32xf32>
    %83 = vector.broadcast %82 : vector<1x32xf32> to vector<64x32xf32>
    %84 = arith.mulf %81, %83 : vector<64x32xf32>
    %c0_90 = arith.constant 0 : index
    %c0_91 = arith.constant 0 : index
    %85 = vector.load %arg7[%c0_90, %c0_91] : memref<1x32xf32, #tpu.memory_space<vmem>>, vector<1x32xf32>
    %86 = vector.broadcast %85 : vector<1x32xf32> to vector<64x32xf32>
    %87 = arith.addf %84, %86 : vector<64x32xf32>
    %cst_92 = arith.constant 0.000000e+00 : f32
    %88 = vector.broadcast %cst_92 : f32 to vector<64x32xf32>
    %89 = arith.maximumf %87, %88 : vector<64x32xf32>
    %90 = arith.truncf %89 : vector<64x32xf32> to vector<64x32xbf16>
    %c0_93 = arith.constant 0 : index
    %c0_94 = arith.constant 0 : index
    %91 = vector.load %arg8[%c0_93, %c0_94] : memref<32x128xbf16, #tpu.memory_space<vmem>>, vector<32x128xbf16>
    %cst_95 = arith.constant dense<0.000000e+00> : vector<64x128xf32>
    %92 = tpu.matmul %90, %91, %cst_95 {dimension_numbers = #tpu.dot_dimension_numbers<[1], [0], [0], [1], [0, 0, 1, 1], [], []>} : vector<64x32xbf16>, vector<32x128xbf16>, vector<64x128xf32> -> vector<64x128xf32>
    %c0_96 = arith.constant 0 : index
    %c0_97 = arith.constant 0 : index
    %93 = vector.load %arg9[%c0_96, %c0_97] : memref<1x128xf32, #tpu.memory_space<vmem>>, vector<1x128xf32>
    %94 = vector.broadcast %93 : vector<1x128xf32> to vector<64x128xf32>
    %95 = arith.mulf %92, %94 : vector<64x128xf32>
    %c0_98 = arith.constant 0 : index
    %c0_99 = arith.constant 0 : index
    %96 = vector.load %arg10[%c0_98, %c0_99] : memref<1x128xf32, #tpu.memory_space<vmem>>, vector<1x128xf32>
    %97 = vector.broadcast %96 : vector<1x128xf32> to vector<64x128xf32>
    %98 = arith.addf %95, %97 : vector<64x128xf32>
    %99 = arith.addf %98, %2 : vector<64x128xf32>
    %cst_100 = arith.constant 0.000000e+00 : f32
    %100 = vector.broadcast %cst_100 : f32 to vector<64x128xf32>
    %101 = arith.maximumf %99, %100 : vector<64x128xf32>
    %102 = vector.shape_cast %101 : vector<64x128xf32> to vector<8x8x128xf32>
    %c0_101 = arith.constant 0 : index
    %c0_102 = arith.constant 0 : index
    %c0_103 = arith.constant 0 : index
    %c0_104 = arith.constant 0 : index
    %103 = vector.load %arg11[%c0_101, %c0_102, %c0_103, %c0_104] : memref<1x8x8x128xf32, #tpu.memory_space<vmem>>, vector<1x8x8x128xf32>
    %104 = vector.shape_cast %103 : vector<1x8x8x128xf32> to vector<8x8x128xf32>
    %105 = vector.shape_cast %102 : vector<8x8x128xf32> to vector<1x8x8x128xf32>
    tpu.vector_store %arg11[%c0_101, %c0_102, %c0_103, %c0_104], %105 {strides = array<i32>} : memref<1x8x8x128xf32, #tpu.memory_space<vmem>>, vector<1x8x8x128xf32>,
    return
  }
  func.func @transform_0(%arg0: i32) -> (i32, i32, i32, i32) {
    %c0_i32 = arith.constant 0 : i32
    %c0_i32_0 = arith.constant 0 : i32
    %c0_i32_1 = arith.constant 0 : i32
    %c0_i32_2 = arith.constant 0 : i32
    return %arg0, %c0_i32, %c0_i32_0, %c0_i32_1 : i32, i32, i32, i32
  }
  func.func @transform_1(%arg0: i32) -> (i32, i32) {
    %c0_i32 = arith.constant 0 : i32
    %c0_i32_0 = arith.constant 0 : i32
    %c0_i32_1 = arith.constant 0 : i32
    return %c0_i32, %c0_i32_0 : i32, i32
  }
  func.func @transform_2(%arg0: i32) -> (i32, i32) {
    %c0_i32 = arith.constant 0 : i32
    %c0_i32_0 = arith.constant 0 : i32
    %c0_i32_1 = arith.constant 0 : i32
    return %c0_i32, %c0_i32_0 : i32, i32
  }
  func.func @transform_3(%arg0: i32) -> (i32, i32) {
    %c0_i32 = arith.constant 0 : i32
    %c0_i32_0 = arith.constant 0 : i32
    %c0_i32_1 = arith.constant 0 : i32
    return %c0_i32, %c0_i32_0 : i32, i32
  }
  func.func @transform_4(%arg0: i32) -> (i32, i32, i32, i32) {
    %c0_i32 = arith.constant 0 : i32
    %c0_i32_0 = arith.constant 0 : i32
    %c0_i32_1 = arith.constant 0 : i32
    %c0_i32_2 = arith.constant 0 : i32
    %c0_i32_3 = arith.constant 0 : i32
    return %c0_i32, %c0_i32_0, %c0_i32_1, %c0_i32_2 : i32, i32, i32, i32
  }
  func.func @transform_5(%arg0: i32) -> (i32, i32) {
    %c0_i32 = arith.constant 0 : i32
    %c0_i32_0 = arith.constant 0 : i32
    %c0_i32_1 = arith.constant 0 : i32
    return %c0_i32, %c0_i32_0 : i32, i32
  }
  func.func @transform_6(%arg0: i32) -> (i32, i32) {
    %c0_i32 = arith.constant 0 : i32
    %c0_i32_0 = arith.constant 0 : i32
    %c0_i32_1 = arith.constant 0 : i32
    return %c0_i32, %c0_i32_0 : i32, i32
  }
  func.func @transform_7(%arg0: i32) -> (i32, i32) {
    %c0_i32 = arith.constant 0 : i32
    %c0_i32_0 = arith.constant 0 : i32
    %c0_i32_1 = arith.constant 0 : i32
    return %c0_i32, %c0_i32_0 : i32, i32
  }
  func.func @transform_8(%arg0: i32) -> (i32, i32) {
    %c0_i32 = arith.constant 0 : i32
    %c0_i32_0 = arith.constant 0 : i32
    %c0_i32_1 = arith.constant 0 : i32
    return %c0_i32, %c0_i32_0 : i32, i32
  }
  func.func @transform_9(%arg0: i32) -> (i32, i32) {
    %c0_i32 = arith.constant 0 : i32
    %c0_i32_0 = arith.constant 0 : i32
    %c0_i32_1 = arith.constant 0 : i32
    return %c0_i32, %c0_i32_0 : i32, i32
  }
  func.func @transform_10(%arg0: i32) -> (i32, i32, i32, i32) {
    %c0_i32 = arith.constant 0 : i32
    %c0_i32_0 = arith.constant 0 : i32
    %c0_i32_1 = arith.constant 0 : i32
    %c0_i32_2 = arith.constant 0 : i32
    return %arg0, %c0_i32, %c0_i32_0, %c0_i32_1 : i32, i32, i32, i32
  }
}

</mosaic_0001>

<llo_original>
// kernel: tpu_custom_call.1
$region0: #{tpu_custom_call.1}
  #allocation0 [shape = 'u32[]', space=smem, size = 0x4, offset = 0x4, fixed_abs, tag = 'smem constant byte address 0x4 - core index']
  #allocation1 [shape = 'u32[144,128]{1,0:T(1,128)}', space=vmem, size = 0x12000, scoped, tag = 'internal scratch']
  #allocation2 [shape = 'f32[10,10,32]{2,1,0:T(8,128)}', space=vmem, size = 0x14000, scoped, tag = 'scratch operand']
  %s0 = inlined_call_operand.hbm [shape: f32[2,8,8,128], index: 0, kind: input, shape index: {}]
  %s1 = inlined_call_operand.vmem [shape: bf16[128,32], index: 1, kind: input, shape index: {}]
  %s2 = inlined_call_operand.vmem [shape: f32[1,32], index: 2, kind: input, shape index: {}]
  %s3 = inlined_call_operand.vmem [shape: f32[1,32], index: 3, kind: input, shape index: {}]
  %s4 = inlined_call_operand.hbm [shape: bf16[3,3,32,32], index: 4, kind: input, shape index: {}]
  %s5 = inlined_call_operand.vmem [shape: f32[1,32], index: 5, kind: input, shape index: {}]
  %s6 = inlined_call_operand.vmem [shape: f32[1,32], index: 6, kind: input, shape index: {}]
  %s7 = inlined_call_operand.vmem [shape: bf16[32,128], index: 7, kind: input, shape index: {}]
  %s8 = inlined_call_operand.vmem [shape: f32[1,128], index: 8, kind: input, shape index: {}]
  %s9 = inlined_call_operand.vmem [shape: f32[1,128], index: 9, kind: input, shape index: {}]
  %s10 = inlined_call_operand.hbm [shape: f32[2,8,8,128], index: 10, kind: output, shape index: {}]
  %s11 = sld [smem:[#allocation0]]
  $region81: #{tpu_custom_call.1} parent=0
    _
  %s13 = ssub.s32 1, %s11
  %s14 = scalar_select 0, %s13, %s11
  $region1: #{tpu_custom_call.1} parent=0
    #allocation3 [shape = 'u8[65536]{0}', space=vmem, size = 0x10000, scoped, tag = 'input window, operand 0']
    #allocation4 [shape = 's32[2]{0}', space=sflag, size = 0x8, scoped, tag = 'scoped memory for tpu_custom_call.1']
    #allocation5 [shape = 's32[2]{0}', space=sflag, size = 0x8, scoped, tag = 'scoped memory for tpu_custom_call.1']
    #allocation6 [shape = 'u8[73728]{0}', space=vmem, size = 0x12000, scoped, tag = 'input window, operand 4, single buffered']
    #allocation7 [shape = 's32[1]{0}', space=sflag, size = 0x4, scoped, tag = 'scoped memory for tpu_custom_call.1']
    #allocation8 [shape = 'u8[65536]{0}', space=vmem, size = 0x10000, scoped, tag = 'output window, operand 0']
    %15 = vsyncpa [#allocation4], 0
    %s16 = scalar_lea.sflag [#allocation4], 1
    %17 = vsyncpa %s16, 0
    %18 = vsyncpa [#allocation7], 0
    %19 = vsyncpa [#allocation5], 0
    %s20 = scalar_lea.sflag [#allocation5], 1
    %21 = vsyncpa %s20, 0
    loop: start=0, step=1, limit=4
    $region2: #{tpu_custom_call.1} parent=1 // loop_pre_header
      _
    $region3: #{tpu_custom_call.1} parent=1 // loop_header
      %s23 = sphi 0, %s27
      %p24 = scmp.ge.s32.totalorder %s23, 4
      %s33 = sphi 0, %s35
      %s36 = sphi 0, %s33
      %s37 = sphi 0, %s36
      %s53 = sphi 0, %s37
      %s57 = sphi 0, %s57
      %s59 = sphi 0, %s57
      %s60 = sphi 0, %s59
      %s74 = sphi 0, %s60
      %s78 = sphi 0, %s78
      %s80 = sphi 0, %s78
      %s81 = sphi 0, %s80
      %s95 = sphi 0, %s81
      %s99 = sphi 0, %s99
      %s101 = sphi 0, %s99
      %s102 = sphi 0, %s101
      %s116 = sphi 0, %s102
      %s120 = sphi 0, %s120
      %s122 = sphi 0, %s120
      %s123 = sphi 0, %s122
      %s137 = sphi 0, %s123
      %s141 = sphi 0, %s141
      %s143 = sphi 0, %s141
      %s144 = sphi 0, %s143
      %s158 = sphi 0, %s144
      %s162 = sphi 0, %s162
      %s164 = sphi 0, %s162
      %s165 = sphi 0, %s164
      %s179 = sphi 0, %s165
      %s183 = sphi 0, %s183
      %s185 = sphi 0, %s183
      %s186 = sphi 0, %s185
      %s200 = sphi 0, %s186
      %s204 = sphi 0, %s204
      %s206 = sphi 0, %s204
      %s207 = sphi 0, %s206
      %s221 = sphi 0, %s207
      %s225 = sphi 0, %s225
      %s227 = sphi 0, %s225
      %s228 = sphi 0, %s227
      %s242 = sphi 0, %s228
      %s248 = sphi 0, %s250
      %s251 = sphi 0, %s248
      %s252 = sphi 0, %s251
      %s268 = sphi 0, %s252
    $region4: #{tpu_custom_call.1} parent=1 // loop_header_branch
      %26 = sbr.rel (%p24) target = $region8
    $region5: #{tpu_custom_call.1} parent=1 // loop_body
      %s28 = ssub.s32 %s23, 1
      %s29 = ssub.s32 %s23, 2
      %s30 = sadd.s32 %s23, 1
      %s31 = ssub.s32 %s23, %s30
      %p32 = scmp.eq.s32.totalorder %s31, 0
      %s34 = sadd.s32 %s33, 1
      %s35 = scalar_select %p32, %s33, %s34
      %p38 = pneg %p32
      %p39 = scmp.eq.s32.totalorder %s23, 1
      %p40 = por %p38, %p39
      %p41 = scmp.ne.s32.totalorder %s33, %s36
      %p42 = scmp.eq.s32.totalorder %s23, 0
      %p43 = por %p41, %p42
      %p44 = scmp.ne.s32.totalorder %s33, %s36
      %p45 = scmp.eq.s32.totalorder %s28, 1
      %p46 = por %p44, %p45
      %p47 = scmp.ne.s32.totalorder %s36, %s37
      %p48 = scmp.eq.s32.totalorder %s28, 0
      %p49 = por %p47, %p48
      %p50 = scmp.ne.s32.totalorder %s36, %s37
      %p51 = scmp.eq.s32.totalorder %s29, 1
      %p52 = por %p50, %p51
      %p54 = scmp.ne.s32.totalorder %s37, %s53
      %p55 = scmp.eq.s32.totalorder %s29, 0
      %p56 = por %p54, %p55
      %s58 = sadd.s32 %s57, 1
      %p61 = scmp.eq.s32.totalorder %s23, 1
      %p62 = scmp.ne.s32.totalorder %s57, %s59
      %p63 = scmp.eq.s32.totalorder %s23, 0
      %p64 = por %p62, %p63
      %p65 = scmp.ne.s32.totalorder %s57, %s59
      %p66 = scmp.eq.s32.totalorder %s28, 1
      %p67 = por %p65, %p66
      %p68 = scmp.ne.s32.totalorder %s59, %s60
      %p69 = scmp.eq.s32.totalorder %s28, 0
      %p70 = por %p68, %p69
      %p71 = scmp.ne.s32.totalorder %s59, %s60
      %p72 = scmp.eq.s32.totalorder %s29, 1
      %p73 = por %p71, %p72
      %p75 = scmp.ne.s32.totalorder %s60, %s74
      %p76 = scmp.eq.s32.totalorder %s29, 0
      %p77 = por %p75, %p76
      %s79 = sadd.s32 %s78, 1
      %p82 = scmp.eq.s32.totalorder %s23, 1
      %p83 = scmp.ne.s32.totalorder %s78, %s80
      %p84 = scmp.eq.s32.totalorder %s23, 0
      %p85 = por %p83, %p84
      %p86 = scmp.ne.s32.totalorder %s78, %s80
      %p87 = scmp.eq.s32.totalorder %s28, 1
      %p88 = por %p86, %p87
      %p89 = scmp.ne.s32.totalorder %s80, %s81
      %p90 = scmp.eq.s32.totalorder %s28, 0
      %p91 = por %p89, %p90
      %p92 = scmp.ne.s32.totalorder %s80, %s81
      %p93 = scmp.eq.s32.totalorder %s29, 1
      %p94 = por %p92, %p93
      %p96 = scmp.ne.s32.totalorder %s81, %s95
      %p97 = scmp.eq.s32.totalorder %s29, 0
      %p98 = por %p96, %p97
      %s100 = sadd.s32 %s99, 1
      %p103 = scmp.eq.s32.totalorder %s23, 1
      %p104 = scmp.ne.s32.totalorder %s99, %s101
      %p105 = scmp.eq.s32.totalorder %s23, 0
      %p106 = por %p104, %p105
      %p107 = scmp.ne.s32.totalorder %s99, %s101
      %p108 = scmp.eq.s32.totalorder %s28, 1
      %p109 = por %p107, %p108
      %p110 = scmp.ne.s32.totalorder %s101, %s102
      %p111 = scmp.eq.s32.totalorder %s28, 0
      %p112 = por %p110, %p111
      %p113 = scmp.ne.s32.totalorder %s101, %s102
      %p114 = scmp.eq.s32.totalorder %s29, 1
      %p115 = por %p113, %p114
      %p117 = scmp.ne.s32.totalorder %s102, %s116
      %p118 = scmp.eq.s32.totalorder %s29, 0
      %p119 = por %p117, %p118
      %s121 = sadd.s32 %s120, 1
      %p124 = scmp.eq.s32.totalorder %s23, 1
      %p125 = scmp.ne.s32.totalorder %s120, %s122
      %p126 = scmp.eq.s32.totalorder %s23, 0
      %p127 = por %p125, %p126
      %p128 = scmp.ne.s32.totalorder %s120, %s122
      %p129 = scmp.eq.s32.totalorder %s28, 1
      %p130 = por %p128, %p129
      %p131 = scmp.ne.s32.totalorder %s122, %s123
      %p132 = scmp.eq.s32.totalorder %s28, 0
      %p133 = por %p131, %p132
      %p134 = scmp.ne.s32.totalorder %s122, %s123
      %p135 = scmp.eq.s32.totalorder %s29, 1
      %p136 = por %p134, %p135
      %p138 = scmp.ne.s32.totalorder %s123, %s137
      %p139 = scmp.eq.s32.totalorder %s29, 0
      %p140 = por %p138, %p139
      %s142 = sadd.s32 %s141, 1
      %p145 = scmp.eq.s32.totalorder %s23, 1
      %p146 = scmp.ne.s32.totalorder %s141, %s143
      %p147 = scmp.eq.s32.totalorder %s23, 0
      %p148 = por %p146, %p147
      %p149 = scmp.ne.s32.totalorder %s141, %s143
      %p150 = scmp.eq.s32.totalorder %s28, 1
      %p151 = por %p149, %p150
      %p152 = scmp.ne.s32.totalorder %s143, %s144
      %p153 = scmp.eq.s32.totalorder %s28, 0
      %p154 = por %p152, %p153
      %p155 = scmp.ne.s32.totalorder %s143, %s144
      %p156 = scmp.eq.s32.totalorder %s29, 1
      %p157 = por %p155, %p156
      %p159 = scmp.ne.s32.totalorder %s144, %s158
      %p160 = scmp.eq.s32.totalorder %s29, 0
      %p161 = por %p159, %p160
      %s163 = sadd.s32 %s162, 1
      %p166 = scmp.eq.s32.totalorder %s23, 1
      %p167 = scmp.ne.s32.totalorder %s162, %s164
      %p168 = scmp.eq.s32.totalorder %s23, 0
      %p169 = por %p167, %p168
      %p170 = scmp.ne.s32.totalorder %s162, %s164
      %p171 = scmp.eq.s32.totalorder %s28, 1
      %p172 = por %p170, %p171
      %p173 = scmp.ne.s32.totalorder %s164, %s165
      %p174 = scmp.eq.s32.totalorder %s28, 0
      %p175 = por %p173, %p174
      %p176 = scmp.ne.s32.totalorder %s164, %s165
      %p177 = scmp.eq.s32.totalorder %s29, 1
      %p178 = por %p176, %p177
      %p180 = scmp.ne.s32.totalorder %s165, %s179
      %p181 = scmp.eq.s32.totalorder %s29, 0
      %p182 = por %p180, %p181
      %s184 = sadd.s32 %s183, 1
      %p187 = scmp.eq.s32.totalorder %s23, 1
      %p188 = scmp.ne.s32.totalorder %s183, %s185
      %p189 = scmp.eq.s32.totalorder %s23, 0
      %p190 = por %p188, %p189
      %p191 = scmp.ne.s32.totalorder %s183, %s185
      %p192 = scmp.eq.s32.totalorder %s28, 1
      %p193 = por %p191, %p192
      %p194 = scmp.ne.s32.totalorder %s185, %s186
      %p195 = scmp.eq.s32.totalorder %s28, 0
      %p196 = por %p194, %p195
      %p197 = scmp.ne.s32.totalorder %s185, %s186
      %p198 = scmp.eq.s32.totalorder %s29, 1
      %p199 = por %p197, %p198
      %p201 = scmp.ne.s32.totalorder %s186, %s200
      %p202 = scmp.eq.s32.totalorder %s29, 0
      %p203 = por %p201, %p202
      %s205 = sadd.s32 %s204, 1
      %p208 = scmp.eq.s32.totalorder %s23, 1
      %p209 = scmp.ne.s32.totalorder %s204, %s206
      %p210 = scmp.eq.s32.totalorder %s23, 0
      %p211 = por %p209, %p210
      %p212 = scmp.ne.s32.totalorder %s204, %s206
      %p213 = scmp.eq.s32.totalorder %s28, 1
      %p214 = por %p212, %p213
      %p215 = scmp.ne.s32.totalorder %s206, %s207
      %p216 = scmp.eq.s32.totalorder %s28, 0
      %p217 = por %p215, %p216
      %p218 = scmp.ne.s32.totalorder %s206, %s207
      %p219 = scmp.eq.s32.totalorder %s29, 1
      %p220 = por %p218, %p219
      %p222 = scmp.ne.s32.totalorder %s207, %s221
      %p223 = scmp.eq.s32.totalorder %s29, 0
      %p224 = por %p222, %p223
      %s226 = sadd.s32 %s225, 1
      %p229 = scmp.eq.s32.totalorder %s23, 1
      %p230 = scmp.ne.s32.totalorder %s225, %s227
      %p231 = scmp.eq.s32.totalorder %s23, 0
      %p232 = por %p230, %p231
      %p233 = scmp.ne.s32.totalorder %s225, %s227
      %p234 = scmp.eq.s32.totalorder %s28, 1
      %p235 = por %p233, %p234
      %p236 = scmp.ne.s32.totalorder %s227, %s228
      %p237 = scmp.eq.s32.totalorder %s28, 0
      %p238 = por %p236, %p237
      %p239 = scmp.ne.s32.totalorder %s227, %s228
      %p240 = scmp.eq.s32.totalorder %s29, 1
      %p241 = por %p239, %p240
      %p243 = scmp.ne.s32.totalorder %s228, %s242
      %p244 = scmp.eq.s32.totalorder %s29, 0
      %p245 = por %p243, %p244
      %s246 = ssub.s32 %s23, %s30
      %p247 = scmp.eq.s32.totalorder %s246, 0
      %s249 = sadd.s32 %s248, 1
      %s250 = scalar_select %p247, %s248, %s249
      %p253 = pneg %p247
      %p254 = scmp.eq.s32.totalorder %s23, 1
      %p255 = por %p253, %p254
      %p256 = scmp.ne.s32.totalorder %s248, %s251
      %p257 = scmp.eq.s32.totalorder %s23, 0
      %p258 = por %p256, %p257
      %p259 = scmp.ne.s32.totalorder %s248, %s251
      %p260 = scmp.eq.s32.totalorder %s28, 1
      %p261 = por %p259, %p260
      %p262 = scmp.ne.s32.totalorder %s251, %s252
      %p263 = scmp.eq.s32.totalorder %s28, 0
      %p264 = por %p262, %p263
      %p265 = scmp.ne.s32.totalorder %s251, %s252
      %p266 = scmp.eq.s32.totalorder %s29, 1
      %p267 = por %p265, %p266
      %p269 = scmp.ne.s32.totalorder %s252, %s268
      %p270 = scmp.eq.s32.totalorder %s29, 0
      %p271 = por %p269, %p270
      %p272 = scmp.le.s32.totalorder 1, %s23
      %p273 = scmp.lt.s32.totalorder %s23, 3
      %p274 = pnand %p272, %p273
      %p275 = pneg %p274
      // Predicated region
      $region9: #{tpu_custom_call.1} parent=5 // pred_check
        _
      $region10: #{tpu_custom_call.1} parent=5 // pred_check_branch
        %277 = sbr.rel (%p274) target = $region12
      $region11: #{tpu_custom_call.1} parent=5 // pred_region
        %s278 = ssub.s32 %s23, 1
        // Predicated region
        $region13: #{tpu_custom_call.1} parent=11 // pred_check
          %p279 = pneg %p70
        $region14: #{tpu_custom_call.1} parent=11 // pred_check_branch
          %281 = sbr.rel (%p279) target = $region16
        $region15: #{tpu_custom_call.1} parent=11 // pred_region
          _
        $region16: #{tpu_custom_call.1} parent=11 // pred_fallthru
          _
        // Predicated region
        $region17: #{tpu_custom_call.1} parent=11 // pred_check
          %p282 = pneg %p91
        $region18: #{tpu_custom_call.1} parent=11 // pred_check_branch
          %284 = sbr.rel (%p282) target = $region20
        $region19: #{tpu_custom_call.1} parent=11 // pred_region
          _
        $region20: #{tpu_custom_call.1} parent=11 // pred_fallthru
          _
        // Predicated region
        $region21: #{tpu_custom_call.1} parent=11 // pred_check
          %p285 = pneg %p112
        $region22: #{tpu_custom_call.1} parent=11 // pred_check_branch
          %287 = sbr.rel (%p285) target = $region24
        $region23: #{tpu_custom_call.1} parent=11 // pred_region
          _
        $region24: #{tpu_custom_call.1} parent=11 // pred_fallthru
          _
        // Predicated region
        $region25: #{tpu_custom_call.1} parent=11 // pred_check
          %p288 = pneg %p133
        $region26: #{tpu_custom_call.1} parent=11 // pred_check_branch
          %290 = sbr.rel (%p288) target = $region28
        $region27: #{tpu_custom_call.1} parent=11 // pred_region
          %s292 = ssub.s32 2304, 2304
          %293 = vsyncadd [#allocation7], %s292
          %s294 = sshll.u32 [#allocation6], 4
          %s295 = int_to_ptr.vmem [resolvable:$true] %s294
          %300 = dma.hbm_to_vmem [thread:$0]  %s4, 2304, %s295, [#allocation7], 64, 64, 4
        $region28: #{tpu_custom_call.1} parent=11 // pred_fallthru
          _
        // Predicated region
        $region29: #{tpu_custom_call.1} parent=11 // pred_check
          %p301 = pneg %p154
        $region30: #{tpu_custom_call.1} parent=11 // pred_check_branch
          %303 = sbr.rel (%p301) target = $region32
        $region31: #{tpu_custom_call.1} parent=11 // pred_region
          _
        $region32: #{tpu_custom_call.1} parent=11 // pred_fallthru
          _
        // Predicated region
        $region33: #{tpu_custom_call.1} parent=11 // pred_check
          %p304 = pneg %p175
        $region34: #{tpu_custom_call.1} parent=11 // pred_check_branch
          %306 = sbr.rel (%p304) target = $region36
        $region35: #{tpu_custom_call.1} parent=11 // pred_region
          _
        $region36: #{tpu_custom_call.1} parent=11 // pred_fallthru
          _
        // Predicated region
        $region37: #{tpu_custom_call.1} parent=11 // pred_check
          %p307 = pneg %p196
        $region38: #{tpu_custom_call.1} parent=11 // pred_check_branch
          %309 = sbr.rel (%p307) target = $region40
        $region39: #{tpu_custom_call.1} parent=11 // pred_region
          _
        $region40: #{tpu_custom_call.1} parent=11 // pred_fallthru
          _
        // Predicated region
        $region41: #{tpu_custom_call.1} parent=11 // pred_check
          %p310 = pneg %p217
        $region42: #{tpu_custom_call.1} parent=11 // pred_check_branch
          %312 = sbr.rel (%p310) target = $region44
        $region43: #{tpu_custom_call.1} parent=11 // pred_region
          _
        $region44: #{tpu_custom_call.1} parent=11 // pred_fallthru
          _
        // Predicated region
        $region45: #{tpu_custom_call.1} parent=11 // pred_check
          %p313 = pneg %p238
        $region46: #{tpu_custom_call.1} parent=11 // pred_check_branch
          %315 = sbr.rel (%p313) target = $region48
        $region47: #{tpu_custom_call.1} parent=11 // pred_region
          _
        $region48: #{tpu_custom_call.1} parent=11 // pred_fallthru
          _
      $region12: #{tpu_custom_call.1} parent=5 // pred_fallthru
        _
      %p316 = scmp.lt.s32.totalorder %s23, 2
      // Predicated region
      $region49: #{tpu_custom_call.1} parent=5 // pred_check
        %p317 = pneg %p316
      $region50: #{tpu_custom_call.1} parent=5 // pred_check_branch
        %319 = sbr.rel (%p317) target = $region52
      $region51: #{tpu_custom_call.1} parent=5 // pred_region
        // Predicated region
        $region53: #{tpu_custom_call.1} parent=51 // pred_check
          %p320 = pneg %p43
        $region54: #{tpu_custom_call.1} parent=51 // pred_check_branch
          %322 = sbr.rel (%p320) target = $region56
        $region55: #{tpu_custom_call.1} parent=51 // pred_region
          %s323 = sand.u32 %s33, 1
          %s324 = scalar_lea.sflag [#allocation4], %s323
          %s325 = sand.u32 %s33, 1
          %s326 = smul.addr %s325, 64
          %s327 = scalar_lea.vmem [#allocation3], %s326
          %s329 = ssub.s32 1024, 1024
          %330 = vsyncadd %s324, %s329
          %s331 = smul.addr %s23, 8
          %s332 = smul.addr %s331, 128
          %s333 = scalar_lea.hbm %s0, %s332
          %s334 = sshll.u32 %s327, 4
          %s335 = int_to_ptr.vmem [resolvable:$true] %s334
          %340 = dma.hbm_to_vmem [thread:$0]  %s333, 1024, %s335, %s324, 128, 128, 8
        $region56: #{tpu_custom_call.1} parent=51 // pred_fallthru
          _
      $region52: #{tpu_custom_call.1} parent=5 // pred_fallthru
        _
      %p341 = scmp.le.s32.totalorder 1, %s23
      %p342 = scmp.lt.s32.totalorder %s23, 3
      %p343 = pnand %p341, %p342
      %p344 = pneg %p343
      // Predicated region
      $region57: #{tpu_custom_call.1} parent=5 // pred_check
        _
      $region58: #{tpu_custom_call.1} parent=5 // pred_check_branch
        %346 = sbr.rel (%p343) target = $region60
      $region59: #{tpu_custom_call.1} parent=5 // pred_region
        %s347 = ssub.s32 %s23, 1
        %s348 = sand.u32 %s36, 1
        %s349 = scalar_lea.sflag [#allocation4], %s348
        %s350 = sand.u32 %s36, 1
        %s351 = smul.addr %s350, 64
        %s352 = scalar_lea.vmem [#allocation3], %s351
        // Predicated region
        $region61: #{tpu_custom_call.1} parent=59 // pred_check
          %p353 = pneg %p49
        $region62: #{tpu_custom_call.1} parent=59 // pred_check_branch
          %355 = sbr.rel (%p353) target = $region64
        $region63: #{tpu_custom_call.1} parent=59 // pred_region
          %356 = dma.done %s349, 1024
        $region64: #{tpu_custom_call.1} parent=59 // pred_fallthru
          _
        // Predicated region
        $region65: #{tpu_custom_call.1} parent=59 // pred_check
          %p357 = pneg %p133
        $region66: #{tpu_custom_call.1} parent=59 // pred_check_branch
          %359 = sbr.rel (%p357) target = $region68
        $region67: #{tpu_custom_call.1} parent=59 // pred_region
          %360 = dma.done [#allocation7], 2304
        $region68: #{tpu_custom_call.1} parent=59 // pred_fallthru
          _
        %s361 = sand.u32 %s36, 1
        %s362 = scalar_lea.sflag [#allocation4], %s361
        %s363 = sand.u32 %s36, 1
        %s364 = smul.addr %s363, 64
        %s365 = scalar_lea.vmem [#allocation3], %s364
        %p366 = pneg %p49
        %p367 = pneg %p46
        %p368 = pneg %p70
        %p369 = pneg %p67
        %p370 = pneg %p91
        %p371 = pneg %p88
        %p372 = pneg %p112
        %p373 = pneg %p109
        %p374 = pneg %p133
        %p375 = pneg %p130
        %p376 = pneg %p154
        %p377 = pneg %p151
        %p378 = pneg %p175
        %p379 = pneg %p172
        %p380 = pneg %p196
        %p381 = pneg %p193
        %p382 = pneg %p217
        %p383 = pneg %p214
        %p384 = pneg %p238
        %p385 = pneg %p235
        %p386 = pneg %p264
        %p387 = pneg %p261
        %s388 = sand.u32 %s251, 1
        %s389 = scalar_lea.sflag [#allocation5], %s388
        %s390 = sand.u32 %s251, 1
        %s391 = smul.addr %s390, 64
        %s392 = scalar_lea.vmem [#allocation8], %s391
        %v394 = vld [vmem:[%s352] sm:$0xff]
        %v395 = vld [vmem:[%s352 + $0x8] sm:$0xff]
        %v396 = vld [vmem:[%s352 + $0x10] sm:$0xff]
        %v397 = vld [vmem:[%s352 + $0x18] sm:$0xff]
        %v398 = vld [vmem:[%s352 + $0x20] sm:$0xff]
        %v399 = vld [vmem:[%s352 + $0x28] sm:$0xff]
        %v400 = vld [vmem:[%s352 + $0x30] sm:$0xff]
        %v401 = vld [vmem:[%s352 + $0x38] sm:$0xff]
        %v402 = vpack.c.bf16 %v395, %v394
        %v403 = vpack.c.bf16 %v397, %v396
        %v404 = vpack.c.bf16 %v399, %v398
        %v405 = vpack.c.bf16 %v401, %v400
        %v406 = vld [vmem:[%s1] sm:$0xf]
        %v407 = vld [vmem:[%s1 + $0x4] sm:$0xf]
        %v408 = vld [vmem:[%s1 + $0x8] sm:$0xf]
        %v409 = vld [vmem:[%s1 + $0xc] sm:$0xf]
        %v410 = vld [vmem:[%s1 + $0x10] sm:$0xf]
        %v411 = vld [vmem:[%s1 + $0x14] sm:$0xf]
        %v412 = vld [vmem:[%s1 + $0x18] sm:$0xf]
        %v413 = vld [vmem:[%s1 + $0x1c] sm:$0xf]
        %v414 = vld [vmem:[%s1 + $0x20] sm:$0xf]
        %v415 = vld [vmem:[%s1 + $0x24] sm:$0xf]
        %v416 = vld [vmem:[%s1 + $0x28] sm:$0xf]
        %v417 = vld [vmem:[%s1 + $0x2c] sm:$0xf]
        %v418 = vld [vmem:[%s1 + $0x30] sm:$0xf]
        %v419 = vld [vmem:[%s1 + $0x34] sm:$0xf]
        %v420 = vld [vmem:[%s1 + $0x38] sm:$0xf]
        %v421 = vld [vmem:[%s1 + $0x3c] sm:$0xf]
        %v438 = vunpack.c.l.b16 %v406
        %v439 = vunpack.c.l.b16 %v407
        %v440 = vunpack.c.l.b16 %v408
        %v441 = vunpack.c.l.b16 %v409
        %v442 = vunpack.c.l.b16 %v410
        %v443 = vunpack.c.l.b16 %v411
        %v444 = vunpack.c.l.b16 %v412
        %v445 = vunpack.c.l.b16 %v413
        %v446 = vunpack.c.l.b16 %v414
        %v447 = vunpack.c.l.b16 %v415
        %v448 = vunpack.c.l.b16 %v416
        %v449 = vunpack.c.l.b16 %v417
        %v450 = vunpack.c.l.b16 %v418
        %v451 = vunpack.c.l.b16 %v419
        %v452 = vunpack.c.l.b16 %v420
        %v453 = vunpack.c.l.b16 %v421
        %v454 = vpack.c.b16 %v439, %v438
        %v455 = vpack.c.b16 %v441, %v440
        %v456 = vpack.c.b16 %v443, %v442
        %v457 = vpack.c.b16 %v445, %v444
        %v458 = vpack.c.b16 %v447, %v446
        %v459 = vpack.c.b16 %v449, %v448
        %v460 = vpack.c.b16 %v451, %v450
        %v461 = vpack.c.b16 %v453, %v452
        %470 = vmatprep.subr.bf16.mxu0 0
        %471 = vmatpush1.bf16.msra.mxu0 %v461
        %472 = vmatprep.subr.bf16.mxu0 0
        %473 = vmatpush1.bf16.msra.mxu0 %v460
        %474 = vmatprep.subr.bf16.mxu0 0
        %475 = vmatpush1.bf16.msra.mxu0 %v459
        %476 = vmatprep.subr.bf16.mxu0 0
        %477 = vmatpush1.bf16.msra.mxu0 %v458
        %478 = vmatprep.subr.bf16.mxu0 0
        %479 = vmatpush1.bf16.msra.mxu0 %v457
        %480 = vmatprep.subr.bf16.mxu0 0
        %481 = vmatpush1.bf16.msra.mxu0 %v456
        %482 = vmatprep.subr.bf16.mxu0 0
        %483 = vmatpush1.bf16.msra.mxu0 %v455
        %484 = vmatprep.subr.bf16.mxu0 0
        %485 = vmatpush1.bf16.msra.mxu0 %v454
        %486 = vmatprep.subr.bf16.mxu0 0
        %487 = vmatpush2.bf16.msra.mxu0 0
        %488 = vmatprep.subr.bf16.mxu0 0
        %489 = vmatpush2.bf16.msra.mxu0 0
        %490 = vmatprep.subr.bf16.mxu0 0
        %491 = vmatpush2.bf16.msra.mxu0 0
        %492 = vmatprep.subr.bf16.mxu0 0
        %493 = vmatpush2.bf16.msra.mxu0 0
        %494 = vmatprep.subr.bf16.mxu0 0
        %495 = vmatpush2.bf16.msra.mxu0 0
        %496 = vmatprep.subr.bf16.mxu0 0
        %497 = vmatpush2.bf16.msra.mxu0 0
        %498 = vmatprep.subr.bf16.mxu0 0
        %499 = vmatpush2.bf16.msra.mxu0 0
        %500 = vmatprep.subr.bf16.mxu0 0
        %501 = vmatpush2.bf16.msra.mxu0 0
        %502 = vmatprep.mubr.bf16.mxu0 0
        %503 = vmatmul.mubr.bf16.gmra.mxu0 %v402
        %v504 = vpop.f32.mrf.mxu0
        %v505 = vadd.f32 0.0, %v504
        %v506 = vpop.f32.mrf.mxu0
        %v507 = vpop.f32.mrf.mxu0
        %v508 = vadd.f32 0.0, %v507
        %v509 = vpop.f32.mrf.mxu0
        %510 = vmatprep.mubr.bf16.mxu0 0
        %511 = vmatmul.mubr.bf16.gmra.mxu0 %v403
        %v512 = vpop.f32.mrf.mxu0
        %v513 = vadd.f32 0.0, %v512
        %v514 = vpop.f32.mrf.mxu0
        %v515 = vpop.f32.mrf.mxu0
        %v516 = vadd.f32 0.0, %v515
        %v517 = vpop.f32.mrf.mxu0
        %518 = vmatprep.mubr.bf16.mxu0 0
        %519 = vmatmul.mubr.bf16.gmra.mxu0 %v404
        %v520 = vpop.f32.mrf.mxu0
        %v521 = vadd.f32 0.0, %v520
        %v522 = vpop.f32.mrf.mxu0
        %v523 = vpop.f32.mrf.mxu0
        %v524 = vadd.f32 0.0, %v523
        %v525 = vpop.f32.mrf.mxu0
        %526 = vmatprep.mubr.bf16.mxu0 0
        %527 = vmatmul.mubr.bf16.gmra.mxu0 %v405
        %v528 = vpop.f32.mrf.mxu0
        %v529 = vadd.f32 0.0, %v528
        %v530 = vpop.f32.mrf.mxu0
        %v531 = vpop.f32.mrf.mxu0
        %v532 = vadd.f32 0.0, %v531
        %v533 = vpop.f32.mrf.mxu0
        %534 = vdwg.mxu0
        %v535 = vld [vmem:[%s2] sm:$0x1]
        %v537 = vlaneseq
        %v538 = vshrl.u32 %v537, 7
        %v539 = vsub.s32 0, %v538
        %v540 = vrot.slane %v535, %v539
        %v542 = vmul.f32 %v505, %v540
        %v543 = vmul.f32 %v508, %v540
        %v544 = vmul.f32 %v513, %v540
        %v545 = vmul.f32 %v516, %v540
        %v546 = vmul.f32 %v521, %v540
        %v547 = vmul.f32 %v524, %v540
        %v548 = vmul.f32 %v529, %v540
        %v549 = vmul.f32 %v532, %v540
        %v550 = vld [vmem:[%s3] sm:$0x1]
        %v552 = vlaneseq
        %v553 = vshrl.u32 %v552, 7
        %v554 = vsub.s32 0, %v553
        %v555 = vrot.slane %v550, %v554
        %v557 = vadd.f32 %v542, %v555
        %v558 = vadd.f32 %v543, %v555
        %v559 = vadd.f32 %v544, %v555
        %v560 = vadd.f32 %v545, %v555
        %v561 = vadd.f32 %v546, %v555
        %v562 = vadd.f32 %v547, %v555
        %v563 = vadd.f32 %v548, %v555
        %v564 = vadd.f32 %v549, %v555
        %v565 = vmax.f32 %v557, 0.0
        %v566 = vmax.f32 %v558, 0.0
        %v567 = vmax.f32 %v559, 0.0
        %v568 = vmax.f32 %v560, 0.0
        %v569 = vmax.f32 %v561, 0.0
        %v570 = vmax.f32 %v562, 0.0
        %v571 = vmax.f32 %v563, 0.0
        %v572 = vmax.f32 %v564, 0.0
        %vm573 = vcmask 261120
        %574 = vst.msk [vmem:[#allocation2] sm:$0xff] %vm573, 0.0
        %vm575 = vcmask 254976
        %576 = vst.msk [vmem:[#allocation2 + $0x8] sm:$0x3] %vm575, 0.0
        %577 = vst.msk [vmem:[#allocation2 + $0x10] sm:$0xff] %vm573, 0.0
        %578 = vst.msk [vmem:[#allocation2 + $0x18] sm:$0x3] %vm575, 0.0
        %579 = vst.msk [vmem:[#allocation2 + $0x20] sm:$0xff] %vm573, 0.0
        %580 = vst.msk [vmem:[#allocation2 + $0x28] sm:$0x3] %vm575, 0.0
        %581 = vst.msk [vmem:[#allocation2 + $0x30] sm:$0xff] %vm573, 0.0
        %582 = vst.msk [vmem:[#allocation2 + $0x38] sm:$0x3] %vm575, 0.0
        %583 = vst.msk [vmem:[#allocation2 + $0x40] sm:$0xff] %vm573, 0.0
        %584 = vst.msk [vmem:[#allocation2 + $0x48] sm:$0x3] %vm575, 0.0
        %585 = vst.msk [vmem:[#allocation2 + $0x50] sm:$0xff] %vm573, 0.0
        %586 = vst.msk [vmem:[#allocation2 + $0x58] sm:$0x3] %vm575, 0.0
        %587 = vst.msk [vmem:[#allocation2 + $0x60] sm:$0xff] %vm573, 0.0
        %588 = vst.msk [vmem:[#allocation2 + $0x68] sm:$0x3] %vm575, 0.0
        %589 = vst.msk [vmem:[#allocation2 + $0x70] sm:$0xff] %vm573, 0.0
        %590 = vst.msk [vmem:[#allocation2 + $0x78] sm:$0x3] %vm575, 0.0
        %591 = vst.msk [vmem:[#allocation2 + $0x80] sm:$0xff] %vm573, 0.0
        %592 = vst.msk [vmem:[#allocation2 + $0x88] sm:$0x3] %vm575, 0.0
        %593 = vst.msk [vmem:[#allocation2 + $0x90] sm:$0xff] %vm573, 0.0
        %594 = vst.msk [vmem:[#allocation2 + $0x98] sm:$0x3] %vm575, 0.0
        %s595 = scalar_lea.vmem [#allocation2], 16
        %596 = vst.msk [vmem:[%s595 + $0x1] sm:$0xff] %vm573, %v565
        %597 = vst.msk [vmem:[%s595 + $0x11] sm:$0xff] %vm573, %v566
        %598 = vst.msk [vmem:[%s595 + $0x21] sm:$0xff] %vm573, %v567
        %599 = vst.msk [vmem:[%s595 + $0x31] sm:$0xff] %vm573, %v568
        %600 = vst.msk [vmem:[%s595 + $0x41] sm:$0xff] %vm573, %v569
        %601 = vst.msk [vmem:[%s595 + $0x51] sm:$0xff] %vm573, %v570
        %602 = vst.msk [vmem:[%s595 + $0x61] sm:$0xff] %vm573, %v571
        %603 = vst.msk [vmem:[%s595 + $0x71] sm:$0xff] %vm573, %v572
        %v604 = vld [vmem:[#allocation2] sm:$0xff]
        %v605 = vld [vmem:[#allocation2 + $0x10] sm:$0xff]
        %v606 = vld [vmem:[#allocation2 + $0x20] sm:$0xff]
        %v607 = vld [vmem:[#allocation2 + $0x30] sm:$0xff]
        %v608 = vld [vmem:[#allocation2 + $0x40] sm:$0xff]
        %v609 = vld [vmem:[#allocation2 + $0x50] sm:$0xff]
        %v610 = vld [vmem:[#allocation2 + $0x60] sm:$0xff]
        %v611 = vld [vmem:[#allocation2 + $0x70] sm:$0xff]
        %v612 = vpack.c.bf16 %v605, %v604
        %v613 = vpack.c.bf16 %v607, %v606
        %v614 = vpack.c.bf16 %v609, %v608
        %v615 = vpack.c.bf16 %v611, %v610
        %v616 = vld [vmem:[#allocation6] sm:$0xf]
        %v617 = vld [vmem:[#allocation6 + $0x4] sm:$0xf]
        %v618 = vld [vmem:[#allocation6 + $0x8] sm:$0xf]
        %v619 = vld [vmem:[#allocation6 + $0xc] sm:$0xf]
        %v620 = vld [vmem:[#allocation2 + $0x1] sm:$0xff]
        %v621 = vld [vmem:[#allocation2 + $0x11] sm:$0xff]
        %v622 = vld [vmem:[#allocation2 + $0x21] sm:$0xff]
        %v623 = vld [vmem:[#allocation2 + $0x31] sm:$0xff]
        %v624 = vld [vmem:[#allocation2 + $0x41] sm:$0xff]
        %v625 = vld [vmem:[#allocation2 + $0x51] sm:$0xff]
        %v626 = vld [vmem:[#allocation2 + $0x61] sm:$0xff]
        %v627 = vld [vmem:[#allocation2 + $0x71] sm:$0xff]
        %v628 = vpack.c.bf16 %v621, %v620
        %v629 = vpack.c.bf16 %v623, %v622
        %v630 = vpack.c.bf16 %v625, %v624
        %v631 = vpack.c.bf16 %v627, %v626
        %s632 = scalar_lea.vmem [#allocation6], 16
        %v633 = vld [vmem:[%s632] sm:$0xf]
        %v634 = vld [vmem:[%s632 + $0x4] sm:$0xf]
        %v635 = vld [vmem:[%s632 + $0x8] sm:$0xf]
        %v636 = vld [vmem:[%s632 + $0xc] sm:$0xf]
        %v641 = vunpack.c.l.b16 %v633
        %v642 = vunpack.c.l.b16 %v634
        %v643 = vunpack.c.l.b16 %v635
        %v644 = vunpack.c.l.b16 %v636
        %v645 = vpack.c.b16 %v642, %v641
        %v646 = vpack.c.b16 %v644, %v643
        %v650 = vsel %vm573, %v628, 0
        %v653 = vsel %vm573, %v629, 0
        %v656 = vsel %vm573, %v630, 0
        %v659 = vsel %vm573, %v631, 0
        %661 = vmatprep.subr.bf16.mxu0 0
        %662 = vmatpush1.bf16.msra.mxu0 0
        %663 = vmatprep.subr.bf16.mxu0 0
        %664 = vmatpush1.bf16.msra.mxu0 0
        %665 = vmatprep.subr.bf16.mxu0 0
        %666 = vmatpush1.bf16.msra.mxu0 0
        %667 = vmatprep.subr.bf16.mxu0 0
        %668 = vmatpush1.bf16.msra.mxu0 0
        %669 = vmatprep.subr.bf16.mxu0 0
        %670 = vmatpush1.bf16.msra.mxu0 0
        %671 = vmatprep.subr.bf16.mxu0 0
        %672 = vmatpush1.bf16.msra.mxu0 0
        %673 = vmatprep.subr.bf16.mxu0 0
        %674 = vmatpush1.bf16.msra.mxu0 %v646
        %675 = vmatprep.subr.bf16.mxu0 0
        %676 = vmatpush1.bf16.msra.mxu0 %v645
        %677 = vmatprep.subr.bf16.mxu0 0
        %678 = vmatpush2.bf16.msra.mxu0 0
        %679 = vmatprep.subr.bf16.mxu0 0
        %680 = vmatpush2.bf16.msra.mxu0 0
        %681 = vmatprep.subr.bf16.mxu0 0
        %682 = vmatpush2.bf16.msra.mxu0 0
        %683 = vmatprep.subr.bf16.mxu0 0
        %684 = vmatpush2.bf16.msra.mxu0 0
        %685 = vmatprep.subr.bf16.mxu0 0
        %686 = vmatpush2.bf16.msra.mxu0 0
        %687 = vmatprep.subr.bf16.mxu0 0
        %688 = vmatpush2.bf16.msra.mxu0 0
        %689 = vmatprep.subr.bf16.mxu0 0
        %690 = vmatpush2.bf16.msra.mxu0 0
        %691 = vmatprep.subr.bf16.mxu0 0
        %692 = vmatpush2.bf16.msra.mxu0 0
        %693 = vmatprep.mubr.bf16.mxu0 0
        %694 = vmatmul.mubr.bf16.gmra.mxu0 %v650
        %v695 = vpop.f32.mrf.mxu0
        %v696 = vadd.f32 0.0, %v695
        %v697 = vpop.f32.mrf.mxu0
        %v698 = vpop.f32.mrf.mxu0
        %v699 = vadd.f32 0.0, %v698
        %v700 = vpop.f32.mrf.mxu0
        %701 = vmatprep.mubr.bf16.mxu0 0
        %702 = vmatmul.mubr.bf16.gmra.mxu0 %v653
        %v703 = vpop.f32.mrf.mxu0
        %v704 = vadd.f32 0.0, %v703
        %v705 = vpop.f32.mrf.mxu0
        %v706 = vpop.f32.mrf.mxu0
        %v707 = vadd.f32 0.0, %v706
        %v708 = vpop.f32.mrf.mxu0
        %709 = vmatprep.mubr.bf16.mxu0 0
        %710 = vmatmul.mubr.bf16.gmra.mxu0 %v656
        %v711 = vpop.f32.mrf.mxu0
        %v712 = vadd.f32 0.0, %v711
        %v713 = vpop.f32.mrf.mxu0
        %v714 = vpop.f32.mrf.mxu0
        %v715 = vadd.f32 0.0, %v714
        %v716 = vpop.f32.mrf.mxu0
        %717 = vmatprep.mubr.bf16.mxu0 0
        %718 = vmatmul.mubr.bf16.gmra.mxu0 %v659
        %v719 = vpop.f32.mrf.mxu0
        %v720 = vadd.f32 0.0, %v719
        %v721 = vpop.f32.mrf.mxu0
        %v722 = vpop.f32.mrf.mxu0
        %v723 = vadd.f32 0.0, %v722
        %v724 = vpop.f32.mrf.mxu0
        %725 = vdwg.mxu0
        %v730 = vunpack.c.l.b16 %v616
        %v731 = vunpack.c.l.b16 %v617
        %v732 = vunpack.c.l.b16 %v618
        %v733 = vunpack.c.l.b16 %v619
        %v734 = vpack.c.b16 %v731, %v730
        %v735 = vpack.c.b16 %v733, %v732
        %v739 = vsel %vm573, %v612, 0
        %v742 = vsel %vm573, %v613, 0
        %v745 = vsel %vm573, %v614, 0
        %v748 = vsel %vm573, %v615, 0
        %750 = vmatprep.subr.bf16.mxu0 0
        %751 = vmatpush1.bf16.msra.mxu0 0
        %752 = vmatprep.subr.bf16.mxu0 0
        %753 = vmatpush1.bf16.msra.mxu0 0
        %754 = vmatprep.subr.bf16.mxu0 0
        %755 = vmatpush1.bf16.msra.mxu0 0
        %756 = vmatprep.subr.bf16.mxu0 0
        %757 = vmatpush1.bf16.msra.mxu0 0
        %758 = vmatprep.subr.bf16.mxu0 0
        %759 = vmatpush1.bf16.msra.mxu0 0
        %760 = vmatprep.subr.bf16.mxu0 0
        %761 = vmatpush1.bf16.msra.mxu0 0
        %762 = vmatprep.subr.bf16.mxu0 0
        %763 = vmatpush1.bf16.msra.mxu0 %v735
        %764 = vmatprep.subr.bf16.mxu0 0
        %765 = vmatpush1.bf16.msra.mxu0 %v734
        %766 = vmatprep.subr.bf16.mxu0 0
        %767 = vmatpush2.bf16.msra.mxu0 0
        %768 = vmatprep.subr.bf16.mxu0 0
        %769 = vmatpush2.bf16.msra.mxu0 0
        %770 = vmatprep.subr.bf16.mxu0 0
        %771 = vmatpush2.bf16.msra.mxu0 0
        %772 = vmatprep.subr.bf16.mxu0 0
        %773 = vmatpush2.bf16.msra.mxu0 0
        %774 = vmatprep.subr.bf16.mxu0 0
        %775 = vmatpush2.bf16.msra.mxu0 0
        %776 = vmatprep.subr.bf16.mxu0 0
        %777 = vmatpush2.bf16.msra.mxu0 0
        %778 = vmatprep.subr.bf16.mxu0 0
        %779 = vmatpush2.bf16.msra.mxu0 0
        %780 = vmatprep.subr.bf16.mxu0 0
        %781 = vmatpush2.bf16.msra.mxu0 0
        %782 = vmatprep.mubr.bf16.mxu0 0
        %783 = vmatmul.mubr.bf16.gmra.mxu0 %v739
        %v784 = vpop.f32.mrf.mxu0
        %v785 = vadd.f32 %v696, %v784
        %v786 = vpop.f32.mrf.mxu0
        %v787 = vpop.f32.mrf.mxu0
        %v788 = vadd.f32 %v699, %v787
        %v789 = vpop.f32.mrf.mxu0
        %790 = vmatprep.mubr.bf16.mxu0 0
        %791 = vmatmul.mubr.bf16.gmra.mxu0 %v742
        %v792 = vpop.f32.mrf.mxu0
        %v793 = vadd.f32 %v704, %v792
        %v794 = vpop.f32.mrf.mxu0
        %v795 = vpop.f32.mrf.mxu0
        %v796 = vadd.f32 %v707, %v795
        %v797 = vpop.f32.mrf.mxu0
        %798 = vmatprep.mubr.bf16.mxu0 0
        %799 = vmatmul.mubr.bf16.gmra.mxu0 %v745
        %v800 = vpop.f32.mrf.mxu0
        %v801 = vadd.f32 %v712, %v800
        %v802 = vpop.f32.mrf.mxu0
        %v803 = vpop.f32.mrf.mxu0
        %v804 = vadd.f32 %v715, %v803
        %v805 = vpop.f32.mrf.mxu0
        %806 = vmatprep.mubr.bf16.mxu0 0
        %807 = vmatmul.mubr.bf16.gmra.mxu0 %v748
        %v808 = vpop.f32.mrf.mxu0
        %v809 = vadd.f32 %v720, %v808
        %v810 = vpop.f32.mrf.mxu0
        %v811 = vpop.f32.mrf.mxu0
        %v812 = vadd.f32 %v723, %v811
        %v813 = vpop.f32.mrf.mxu0
        %814 = vdwg.mxu0
        %v815 = vld [vmem:[#allocation2 + $0x2] sm:$0xff]
        %v816 = vld [vmem:[#allocation2 + $0x12] sm:$0xff]
        %v817 = vld [vmem:[#allocation2 + $0x22] sm:$0xff]
        %v818 = vld [vmem:[#allocation2 + $0x32] sm:$0xff]
        %v819 = vld [vmem:[#allocation2 + $0x42] sm:$0xff]
        %v820 = vld [vmem:[#allocation2 + $0x52] sm:$0xff]
        %v821 = vld [vmem:[#allocation2 + $0x62] sm:$0xff]
        %v822 = vld [vmem:[#allocation2 + $0x72] sm:$0xff]
        %v823 = vpack.c.bf16 %v816, %v815
        %v824 = vpack.c.bf16 %v818, %v817
        %v825 = vpack.c.bf16 %v820, %v819
        %v826 = vpack.c.bf16 %v822, %v821
        %s827 = scalar_lea.vmem [#allocation6], 32
        %v828 = vld [vmem:[%s827] sm:$0xf]
        %v829 = vld [vmem:[%s827 + $0x4] sm:$0xf]
        %v830 = vld [vmem:[%s827 + $0x8] sm:$0xf]
        %v831 = vld [vmem:[%s827 + $0xc] sm:$0xf]
        %v836 = vunpack.c.l.b16 %v828
        %v837 = vunpack.c.l.b16 %v829
        %v838 = vunpack.c.l.b16 %v830
        %v839 = vunpack.c.l.b16 %v831
        %v840 = vpack.c.b16 %v837, %v836
        %v841 = vpack.c.b16 %v839, %v838
        %v845 = vsel %vm573, %v823, 0
        %v848 = vsel %vm573, %v824, 0
        %v851 = vsel %vm573, %v825, 0
        %v854 = vsel %vm573, %v826, 0
        %856 = vmatprep.subr.bf16.mxu0 0
        %857 = vmatpush1.bf16.msra.mxu0 0
        %858 = vmatprep.subr.bf16.mxu0 0
        %859 = vmatpush1.bf16.msra.mxu0 0
        %860 = vmatprep.subr.bf16.mxu0 0
        %861 = vmatpush1.bf16.msra.mxu0 0
        %862 = vmatprep.subr.bf16.mxu0 0
        %863 = vmatpush1.bf16.msra.mxu0 0
        %864 = vmatprep.subr.bf16.mxu0 0
        %865 = vmatpush1.bf16.msra.mxu0 0
        %866 = vmatprep.subr.bf16.mxu0 0
        %867 = vmatpush1.bf16.msra.mxu0 0
        %868 = vmatprep.subr.bf16.mxu0 0
        %869 = vmatpush1.bf16.msra.mxu0 %v841
        %870 = vmatprep.subr.bf16.mxu0 0
        %871 = vmatpush1.bf16.msra.mxu0 %v840
        %872 = vmatprep.subr.bf16.mxu0 0
        %873 = vmatpush2.bf16.msra.mxu0 0
        %874 = vmatprep.subr.bf16.mxu0 0
        %875 = vmatpush2.bf16.msra.mxu0 0
        %876 = vmatprep.subr.bf16.mxu0 0
        %877 = vmatpush2.bf16.msra.mxu0 0
        %878 = vmatprep.subr.bf16.mxu0 0
        %879 = vmatpush2.bf16.msra.mxu0 0
        %880 = vmatprep.subr.bf16.mxu0 0
        %881 = vmatpush2.bf16.msra.mxu0 0
        %882 = vmatprep.subr.bf16.mxu0 0
        %883 = vmatpush2.bf16.msra.mxu0 0
        %884 = vmatprep.subr.bf16.mxu0 0
        %885 = vmatpush2.bf16.msra.mxu0 0
        %886 = vmatprep.subr.bf16.mxu0 0
        %887 = vmatpush2.bf16.msra.mxu0 0
        %888 = vmatprep.mubr.bf16.mxu0 0
        %889 = vmatmul.mubr.bf16.gmra.mxu0 %v845
        %v890 = vpop.f32.mrf.mxu0
        %v891 = vadd.f32 0.0, %v890
        %v892 = vpop.f32.mrf.mxu0
        %v893 = vpop.f32.mrf.mxu0
        %v894 = vadd.f32 0.0, %v893
        %v895 = vpop.f32.mrf.mxu0
        %896 = vmatprep.mubr.bf16.mxu0 0
        %897 = vmatmul.mubr.bf16.gmra.mxu0 %v848
        %v898 = vpop.f32.mrf.mxu0
        %v899 = vadd.f32 0.0, %v898
        %v900 = vpop.f32.mrf.mxu0
        %v901 = vpop.f32.mrf.mxu0
        %v902 = vadd.f32 0.0, %v901
        %v903 = vpop.f32.mrf.mxu0
        %904 = vmatprep.mubr.bf16.mxu0 0
        %905 = vmatmul.mubr.bf16.gmra.mxu0 %v851
        %v906 = vpop.f32.mrf.mxu0
        %v907 = vadd.f32 0.0, %v906
        %v908 = vpop.f32.mrf.mxu0
        %v909 = vpop.f32.mrf.mxu0
        %v910 = vadd.f32 0.0, %v909
        %v911 = vpop.f32.mrf.mxu0
        %912 = vmatprep.mubr.bf16.mxu0 0
        %913 = vmatmul.mubr.bf16.gmra.mxu0 %v854
        %v914 = vpop.f32.mrf.mxu0
        %v915 = vadd.f32 0.0, %v914
        %v916 = vpop.f32.mrf.mxu0
        %v917 = vpop.f32.mrf.mxu0
        %v918 = vadd.f32 0.0, %v917
        %v919 = vpop.f32.mrf.mxu0
        %920 = vdwg.mxu0
        %v921 = vadd.f32 %v785, %v891
        %v922 = vadd.f32 %v788, %v894
        %v923 = vadd.f32 %v793, %v899
        %v924 = vadd.f32 %v796, %v902
        %v925 = vadd.f32 %v801, %v907
        %v926 = vadd.f32 %v804, %v910
        %v927 = vadd.f32 %v809, %v915
        %v928 = vadd.f32 %v812, %v918
        %v929 = vld [vmem:[%s595] sm:$0xff]
        %v930 = vld [vmem:[%s595 + $0x10] sm:$0xff]
        %v931 = vld [vmem:[%s595 + $0x20] sm:$0xff]
        %v932 = vld [vmem:[%s595 + $0x30] sm:$0xff]
        %v933 = vld [vmem:[%s595 + $0x40] sm:$0xff]
        %v934 = vld [vmem:[%s595 + $0x50] sm:$0xff]
        %v935 = vld [vmem:[%s595 + $0x60] sm:$0xff]
        %v936 = vld [vmem:[%s595 + $0x70] sm:$0xff]
        %v937 = vpack.c.bf16 %v930, %v929
        %v938 = vpack.c.bf16 %v932, %v931
        %v939 = vpack.c.bf16 %v934, %v933
        %v940 = vpack.c.bf16 %v936, %v935
        %s941 = scalar_lea.vmem [#allocation6], 48
        %v942 = vld [vmem:[%s941] sm:$0xf]
        %v943 = vld [vmem:[%s941 + $0x4] sm:$0xf]
        %v944 = vld [vmem:[%s941 + $0x8] sm:$0xf]
        %v945 = vld [vmem:[%s941 + $0xc] sm:$0xf]
        %v950 = vunpack.c.l.b16 %v942
        %v951 = vunpack.c.l.b16 %v943
        %v952 = vunpack.c.l.b16 %v944
        %v953 = vunpack.c.l.b16 %v945
        %v954 = vpack.c.b16 %v951, %v950
        %v955 = vpack.c.b16 %v953, %v952
        %v959 = vsel %vm573, %v937, 0
        %v962 = vsel %vm573, %v938, 0
        %v965 = vsel %vm573, %v939, 0
        %v968 = vsel %vm573, %v940, 0
        %970 = vmatprep.subr.bf16.mxu0 0
        %971 = vmatpush1.bf16.msra.mxu0 0
        %972 = vmatprep.subr.bf16.mxu0 0
        %973 = vmatpush1.bf16.msra.mxu0 0
        %974 = vmatprep.subr.bf16.mxu0 0
        %975 = vmatpush1.bf16.msra.mxu0 0
        %976 = vmatprep.subr.bf16.mxu0 0
        %977 = vmatpush1.bf16.msra.mxu0 0
        %978 = vmatprep.subr.bf16.mxu0 0
        %979 = vmatpush1.bf16.msra.mxu0 0
        %980 = vmatprep.subr.bf16.mxu0 0
        %981 = vmatpush1.bf16.msra.mxu0 0
        %982 = vmatprep.subr.bf16.mxu0 0
        %983 = vmatpush1.bf16.msra.mxu0 %v955
        %984 = vmatprep.subr.bf16.mxu0 0
        %985 = vmatpush1.bf16.msra.mxu0 %v954
        %986 = vmatprep.subr.bf16.mxu0 0
        %987 = vmatpush2.bf16.msra.mxu0 0
        %988 = vmatprep.subr.bf16.mxu0 0
        %989 = vmatpush2.bf16.msra.mxu0 0
        %990 = vmatprep.subr.bf16.mxu0 0
        %991 = vmatpush2.bf16.msra.mxu0 0
        %992 = vmatprep.subr.bf16.mxu0 0
        %993 = vmatpush2.bf16.msra.mxu0 0
        %994 = vmatprep.subr.bf16.mxu0 0
        %995 = vmatpush2.bf16.msra.mxu0 0
        %996 = vmatprep.subr.bf16.mxu0 0
        %997 = vmatpush2.bf16.msra.mxu0 0
        %998 = vmatprep.subr.bf16.mxu0 0
        %999 = vmatpush2.bf16.msra.mxu0 0
        %1000 = vmatprep.subr.bf16.mxu0 0
        %1001 = vmatpush2.bf16.msra.mxu0 0
        %1002 = vmatprep.mubr.bf16.mxu0 0
        %1003 = vmatmul.mubr.bf16.gmra.mxu0 %v959
        %v1004 = vpop.f32.mrf.mxu0
        %v1005 = vadd.f32 0.0, %v1004
        %v1006 = vpop.f32.mrf.mxu0
        %v1007 = vpop.f32.mrf.mxu0
        %v1008 = vadd.f32 0.0, %v1007
        %v1009 = vpop.f32.mrf.mxu0
        %1010 = vmatprep.mubr.bf16.mxu0 0
        %1011 = vmatmul.mubr.bf16.gmra.mxu0 %v962
        %v1012 = vpop.f32.mrf.mxu0
        %v1013 = vadd.f32 0.0, %v1012
        %v1014 = vpop.f32.mrf.mxu0
        %v1015 = vpop.f32.mrf.mxu0
        %v1016 = vadd.f32 0.0, %v1015
        %v1017 = vpop.f32.mrf.mxu0
        %1018 = vmatprep.mubr.bf16.mxu0 0
        %1019 = vmatmul.mubr.bf16.gmra.mxu0 %v965
        %v1020 = vpop.f32.mrf.mxu0
        %v1021 = vadd.f32 0.0, %v1020
        %v1022 = vpop.f32.mrf.mxu0
        %v1023 = vpop.f32.mrf.mxu0
        %v1024 = vadd.f32 0.0, %v1023
        %v1025 = vpop.f32.mrf.mxu0
        %1026 = vmatprep.mubr.bf16.mxu0 0
        %1027 = vmatmul.mubr.bf16.gmra.mxu0 %v968
        %v1028 = vpop.f32.mrf.mxu0
        %v1029 = vadd.f32 0.0, %v1028
        %v1030 = vpop.f32.mrf.mxu0
        %v1031 = vpop.f32.mrf.mxu0
        %v1032 = vadd.f32 0.0, %v1031
        %v1033 = vpop.f32.mrf.mxu0
        %1034 = vdwg.mxu0
        %v1035 = vadd.f32 %v921, %v1005
        %v1036 = vadd.f32 %v922, %v1008
        %v1037 = vadd.f32 %v923, %v1013
        %v1038 = vadd.f32 %v924, %v1016
        %v1039 = vadd.f32 %v925, %v1021
        %v1040 = vadd.f32 %v926, %v1024
        %v1041 = vadd.f32 %v927, %v1029
        %v1042 = vadd.f32 %v928, %v1032
        %v1043 = vld [vmem:[%s595 + $0x1] sm:$0xff]
        %v1044 = vld [vmem:[%s595 + $0x11] sm:$0xff]
        %v1045 = vld [vmem:[%s595 + $0x21] sm:$0xff]
        %v1046 = vld [vmem:[%s595 + $0x31] sm:$0xff]
        %v1047 = vld [vmem:[%s595 + $0x41] sm:$0xff]
        %v1048 = vld [vmem:[%s595 + $0x51] sm:$0xff]
        %v1049 = vld [vmem:[%s595 + $0x61] sm:$0xff]
        %v1050 = vld [vmem:[%s595 + $0x71] sm:$0xff]
        %v1051 = vpack.c.bf16 %v1044, %v1043
        %v1052 = vpack.c.bf16 %v1046, %v1045
        %v1053 = vpack.c.bf16 %v1048, %v1047
        %v1054 = vpack.c.bf16 %v1050, %v1049
        %s1055 = scalar_lea.vmem [#allocation6], 64
        %v1056 = vld [vmem:[%s1055] sm:$0xf]
        %v1057 = vld [vmem:[%s1055 + $0x4] sm:$0xf]
        %v1058 = vld [vmem:[%s1055 + $0x8] sm:$0xf]
        %v1059 = vld [vmem:[%s1055 + $0xc] sm:$0xf]
        %v1064 = vunpack.c.l.b16 %v1056
        %v1065 = vunpack.c.l.b16 %v1057
        %v1066 = vunpack.c.l.b16 %v1058
        %v1067 = vunpack.c.l.b16 %v1059
        %v1068 = vpack.c.b16 %v1065, %v1064
        %v1069 = vpack.c.b16 %v1067, %v1066
        %v1073 = vsel %vm573, %v1051, 0
        %v1076 = vsel %vm573, %v1052, 0
        %v1079 = vsel %vm573, %v1053, 0
        %v1082 = vsel %vm573, %v1054, 0
        %1084 = vmatprep.subr.bf16.mxu0 0
        %1085 = vmatpush1.bf16.msra.mxu0 0
        %1086 = vmatprep.subr.bf16.mxu0 0
        %1087 = vmatpush1.bf16.msra.mxu0 0
        %1088 = vmatprep.subr.bf16.mxu0 0
        %1089 = vmatpush1.bf16.msra.mxu0 0
        %1090 = vmatprep.subr.bf16.mxu0 0
        %1091 = vmatpush1.bf16.msra.mxu0 0
        %1092 = vmatprep.subr.bf16.mxu0 0
        %1093 = vmatpush1.bf16.msra.mxu0 0
        %1094 = vmatprep.subr.bf16.mxu0 0
        %1095 = vmatpush1.bf16.msra.mxu0 0
        %1096 = vmatprep.subr.bf16.mxu0 0
        %1097 = vmatpush1.bf16.msra.mxu0 %v1069
        %1098 = vmatprep.subr.bf16.mxu0 0
        %1099 = vmatpush1.bf16.msra.mxu0 %v1068
        %1100 = vmatprep.subr.bf16.mxu0 0
        %1101 = vmatpush2.bf16.msra.mxu0 0
        %1102 = vmatprep.subr.bf16.mxu0 0
        %1103 = vmatpush2.bf16.msra.mxu0 0
        %1104 = vmatprep.subr.bf16.mxu0 0
        %1105 = vmatpush2.bf16.msra.mxu0 0
        %1106 = vmatprep.subr.bf16.mxu0 0
        %1107 = vmatpush2.bf16.msra.mxu0 0
        %1108 = vmatprep.subr.bf16.mxu0 0
        %1109 = vmatpush2.bf16.msra.mxu0 0
        %1110 = vmatprep.subr.bf16.mxu0 0
        %1111 = vmatpush2.bf16.msra.mxu0 0
        %1112 = vmatprep.subr.bf16.mxu0 0
        %1113 = vmatpush2.bf16.msra.mxu0 0
        %1114 = vmatprep.subr.bf16.mxu0 0
        %1115 = vmatpush2.bf16.msra.mxu0 0
        %1116 = vmatprep.mubr.bf16.mxu0 0
        %1117 = vmatmul.mubr.bf16.gmra.mxu0 %v1073
        %v1118 = vpop.f32.mrf.mxu0
        %v1119 = vadd.f32 0.0, %v1118
        %v1120 = vpop.f32.mrf.mxu0
        %v1121 = vpop.f32.mrf.mxu0
        %v1122 = vadd.f32 0.0, %v1121
        %v1123 = vpop.f32.mrf.mxu0
        %1124 = vmatprep.mubr.bf16.mxu0 0
        %1125 = vmatmul.mubr.bf16.gmra.mxu0 %v1076
        %v1126 = vpop.f32.mrf.mxu0
        %v1127 = vadd.f32 0.0, %v1126
        %v1128 = vpop.f32.mrf.mxu0
        %v1129 = vpop.f32.mrf.mxu0
        %v1130 = vadd.f32 0.0, %v1129
        %v1131 = vpop.f32.mrf.mxu0
        %1132 = vmatprep.mubr.bf16.mxu0 0
        %1133 = vmatmul.mubr.bf16.gmra.mxu0 %v1079
        %v1134 = vpop.f32.mrf.mxu0
        %v1135 = vadd.f32 0.0, %v1134
        %v1136 = vpop.f32.mrf.mxu0
        %v1137 = vpop.f32.mrf.mxu0
        %v1138 = vadd.f32 0.0, %v1137
        %v1139 = vpop.f32.mrf.mxu0
        %1140 = vmatprep.mubr.bf16.mxu0 0
        %1141 = vmatmul.mubr.bf16.gmra.mxu0 %v1082
        %v1142 = vpop.f32.mrf.mxu0
        %v1143 = vadd.f32 0.0, %v1142
        %v1144 = vpop.f32.mrf.mxu0
        %v1145 = vpop.f32.mrf.mxu0
        %v1146 = vadd.f32 0.0, %v1145
        %v1147 = vpop.f32.mrf.mxu0
        %1148 = vdwg.mxu0
        %v1149 = vadd.f32 %v1035, %v1119
        %v1150 = vadd.f32 %v1036, %v1122
        %v1151 = vadd.f32 %v1037, %v1127
        %v1152 = vadd.f32 %v1038, %v1130
        %v1153 = vadd.f32 %v1039, %v1135
        %v1154 = vadd.f32 %v1040, %v1138
        %v1155 = vadd.f32 %v1041, %v1143
        %v1156 = vadd.f32 %v1042, %v1146
        %v1157 = vld [vmem:[%s595 + $0x2] sm:$0xff]
        %v1158 = vld [vmem:[%s595 + $0x12] sm:$0xff]
        %v1159 = vld [vmem:[%s595 + $0x22] sm:$0xff]
        %v1160 = vld [vmem:[%s595 + $0x32] sm:$0xff]
        %v1161 = vld [vmem:[%s595 + $0x42] sm:$0xff]
        %v1162 = vld [vmem:[%s595 + $0x52] sm:$0xff]
        %v1163 = vld [vmem:[%s595 + $0x62] sm:$0xff]
        %v1164 = vld [vmem:[%s595 + $0x72] sm:$0xff]
        %v1165 = vpack.c.bf16 %v1158, %v1157
        %v1166 = vpack.c.bf16 %v1160, %v1159
        %v1167 = vpack.c.bf16 %v1162, %v1161
        %v1168 = vpack.c.bf16 %v1164, %v1163
        %s1169 = scalar_lea.vmem [#allocation6], 80
        %v1170 = vld [vmem:[%s1169] sm:$0xf]
        %v1171 = vld [vmem:[%s1169 + $0x4] sm:$0xf]
        %v1172 = vld [vmem:[%s1169 + $0x8] sm:$0xf]
        %v1173 = vld [vmem:[%s1169 + $0xc] sm:$0xf]
        %v1178 = vunpack.c.l.b16 %v1170
        %v1179 = vunpack.c.l.b16 %v1171
        %v1180 = vunpack.c.l.b16 %v1172
        %v1181 = vunpack.c.l.b16 %v1173
        %v1182 = vpack.c.b16 %v1179, %v1178
        %v1183 = vpack.c.b16 %v1181, %v1180
        %v1187 = vsel %vm573, %v1165, 0
        %v1190 = vsel %vm573, %v1166, 0
        %v1193 = vsel %vm573, %v1167, 0
        %v1196 = vsel %vm573, %v1168, 0
        %1198 = vmatprep.subr.bf16.mxu0 0
        %1199 = vmatpush1.bf16.msra.mxu0 0
        %1200 = vmatprep.subr.bf16.mxu0 0
        %1201 = vmatpush1.bf16.msra.mxu0 0
        %1202 = vmatprep.subr.bf16.mxu0 0
        %1203 = vmatpush1.bf16.msra.mxu0 0
        %1204 = vmatprep.subr.bf16.mxu0 0
        %1205 = vmatpush1.bf16.msra.mxu0 0
        %1206 = vmatprep.subr.bf16.mxu0 0
        %1207 = vmatpush1.bf16.msra.mxu0 0
        %1208 = vmatprep.subr.bf16.mxu0 0
        %1209 = vmatpush1.bf16.msra.mxu0 0
        %1210 = vmatprep.subr.bf16.mxu0 0
        %1211 = vmatpush1.bf16.msra.mxu0 %v1183
        %1212 = vmatprep.subr.bf16.mxu0 0
        %1213 = vmatpush1.bf16.msra.mxu0 %v1182
        %1214 = vmatprep.subr.bf16.mxu0 0
        %1215 = vmatpush2.bf16.msra.mxu0 0
        %1216 = vmatprep.subr.bf16.mxu0 0
        %1217 = vmatpush2.bf16.msra.mxu0 0
        %1218 = vmatprep.subr.bf16.mxu0 0
        %1219 = vmatpush2.bf16.msra.mxu0 0
        %1220 = vmatprep.subr.bf16.mxu0 0
        %1221 = vmatpush2.bf16.msra.mxu0 0
        %1222 = vmatprep.subr.bf16.mxu0 0
        %1223 = vmatpush2.bf16.msra.mxu0 0
        %1224 = vmatprep.subr.bf16.mxu0 0
        %1225 = vmatpush2.bf16.msra.mxu0 0
        %1226 = vmatprep.subr.bf16.mxu0 0
        %1227 = vmatpush2.bf16.msra.mxu0 0
        %1228 = vmatprep.subr.bf16.mxu0 0
        %1229 = vmatpush2.bf16.msra.mxu0 0
        %1230 = vmatprep.mubr.bf16.mxu0 0
        %1231 = vmatmul.mubr.bf16.gmra.mxu0 %v1187
        %v1232 = vpop.f32.mrf.mxu0
        %v1233 = vadd.f32 0.0, %v1232
        %v1234 = vpop.f32.mrf.mxu0
        %v1235 = vpop.f32.mrf.mxu0
        %v1236 = vadd.f32 0.0, %v1235
        %v1237 = vpop.f32.mrf.mxu0
        %1238 = vmatprep.mubr.bf16.mxu0 0
        %1239 = vmatmul.mubr.bf16.gmra.mxu0 %v1190
        %v1240 = vpop.f32.mrf.mxu0
        %v1241 = vadd.f32 0.0, %v1240
        %v1242 = vpop.f32.mrf.mxu0
        %v1243 = vpop.f32.mrf.mxu0
        %v1244 = vadd.f32 0.0, %v1243
        %v1245 = vpop.f32.mrf.mxu0
        %1246 = vmatprep.mubr.bf16.mxu0 0
        %1247 = vmatmul.mubr.bf16.gmra.mxu0 %v1193
        %v1248 = vpop.f32.mrf.mxu0
        %v1249 = vadd.f32 0.0, %v1248
        %v1250 = vpop.f32.mrf.mxu0
        %v1251 = vpop.f32.mrf.mxu0
        %v1252 = vadd.f32 0.0, %v1251
        %v1253 = vpop.f32.mrf.mxu0
        %1254 = vmatprep.mubr.bf16.mxu0 0
        %1255 = vmatmul.mubr.bf16.gmra.mxu0 %v1196
        %v1256 = vpop.f32.mrf.mxu0
        %v1257 = vadd.f32 0.0, %v1256
        %v1258 = vpop.f32.mrf.mxu0
        %v1259 = vpop.f32.mrf.mxu0
        %v1260 = vadd.f32 0.0, %v1259
        %v1261 = vpop.f32.mrf.mxu0
        %1262 = vdwg.mxu0
        %v1263 = vadd.f32 %v1149, %v1233
        %v1264 = vadd.f32 %v1150, %v1236
        %v1265 = vadd.f32 %v1151, %v1241
        %v1266 = vadd.f32 %v1152, %v1244
        %v1267 = vadd.f32 %v1153, %v1249
        %v1268 = vadd.f32 %v1154, %v1252
        %v1269 = vadd.f32 %v1155, %v1257
        %v1270 = vadd.f32 %v1156, %v1260
        %s1271 = scalar_lea.vmem [#allocation2], 32
        %v1272 = vld [vmem:[%s1271] sm:$0xff]
        %v1273 = vld [vmem:[%s1271 + $0x10] sm:$0xff]
        %v1274 = vld [vmem:[%s1271 + $0x20] sm:$0xff]
        %v1275 = vld [vmem:[%s1271 + $0x30] sm:$0xff]
        %v1276 = vld [vmem:[%s1271 + $0x40] sm:$0xff]
        %v1277 = vld [vmem:[%s1271 + $0x50] sm:$0xff]
        %v1278 = vld [vmem:[%s1271 + $0x60] sm:$0xff]
        %v1279 = vld [vmem:[%s1271 + $0x70] sm:$0xff]
        %v1280 = vpack.c.bf16 %v1273, %v1272
        %v1281 = vpack.c.bf16 %v1275, %v1274
        %v1282 = vpack.c.bf16 %v1277, %v1276
        %v1283 = vpack.c.bf16 %v1279, %v1278
        %s1284 = scalar_lea.vmem [#allocation6], 96
        %v1285 = vld [vmem:[%s1284] sm:$0xf]
        %v1286 = vld [vmem:[%s1284 + $0x4] sm:$0xf]
        %v1287 = vld [vmem:[%s1284 + $0x8] sm:$0xf]
        %v1288 = vld [vmem:[%s1284 + $0xc] sm:$0xf]
        %v1293 = vunpack.c.l.b16 %v1285
        %v1294 = vunpack.c.l.b16 %v1286
        %v1295 = vunpack.c.l.b16 %v1287
        %v1296 = vunpack.c.l.b16 %v1288
        %v1297 = vpack.c.b16 %v1294, %v1293
        %v1298 = vpack.c.b16 %v1296, %v1295
        %v1302 = vsel %vm573, %v1280, 0
        %v1305 = vsel %vm573, %v1281, 0
        %v1308 = vsel %vm573, %v1282, 0
        %v1311 = vsel %vm573, %v1283, 0
        %1313 = vmatprep.subr.bf16.mxu0 0
        %1314 = vmatpush1.bf16.msra.mxu0 0
        %1315 = vmatprep.subr.bf16.mxu0 0
        %1316 = vmatpush1.bf16.msra.mxu0 0
        %1317 = vmatprep.subr.bf16.mxu0 0
        %1318 = vmatpush1.bf16.msra.mxu0 0
        %1319 = vmatprep.subr.bf16.mxu0 0
        %1320 = vmatpush1.bf16.msra.mxu0 0
        %1321 = vmatprep.subr.bf16.mxu0 0
        %1322 = vmatpush1.bf16.msra.mxu0 0
        %1323 = vmatprep.subr.bf16.mxu0 0
        %1324 = vmatpush1.bf16.msra.mxu0 0
        %1325 = vmatprep.subr.bf16.mxu0 0
        %1326 = vmatpush1.bf16.msra.mxu0 %v1298
        %1327 = vmatprep.subr.bf16.mxu0 0
        %1328 = vmatpush1.bf16.msra.mxu0 %v1297
        %1329 = vmatprep.subr.bf16.mxu0 0
        %1330 = vmatpush2.bf16.msra.mxu0 0
        %1331 = vmatprep.subr.bf16.mxu0 0
        %1332 = vmatpush2.bf16.msra.mxu0 0
        %1333 = vmatprep.subr.bf16.mxu0 0
        %1334 = vmatpush2.bf16.msra.mxu0 0
        %1335 = vmatprep.subr.bf16.mxu0 0
        %1336 = vmatpush2.bf16.msra.mxu0 0
        %1337 = vmatprep.subr.bf16.mxu0 0
        %1338 = vmatpush2.bf16.msra.mxu0 0
        %1339 = vmatprep.subr.bf16.mxu0 0
        %1340 = vmatpush2.bf16.msra.mxu0 0
        %1341 = vmatprep.subr.bf16.mxu0 0
        %1342 = vmatpush2.bf16.msra.mxu0 0
        %1343 = vmatprep.subr.bf16.mxu0 0
        %1344 = vmatpush2.bf16.msra.mxu0 0
        %1345 = vmatprep.mubr.bf16.mxu0 0
        %1346 = vmatmul.mubr.bf16.gmra.mxu0 %v1302
        %v1347 = vpop.f32.mrf.mxu0
        %v1348 = vadd.f32 0.0, %v1347
        %v1349 = vpop.f32.mrf.mxu0
        %v1350 = vpop.f32.mrf.mxu0
        %v1351 = vadd.f32 0.0, %v1350
        %v1352 = vpop.f32.mrf.mxu0
        %1353 = vmatprep.mubr.bf16.mxu0 0
        %1354 = vmatmul.mubr.bf16.gmra.mxu0 %v1305
        %v1355 = vpop.f32.mrf.mxu0
        %v1356 = vadd.f32 0.0, %v1355
        %v1357 = vpop.f32.mrf.mxu0
        %v1358 = vpop.f32.mrf.mxu0
        %v1359 = vadd.f32 0.0, %v1358
        %v1360 = vpop.f32.mrf.mxu0
        %1361 = vmatprep.mubr.bf16.mxu0 0
        %1362 = vmatmul.mubr.bf16.gmra.mxu0 %v1308
        %v1363 = vpop.f32.mrf.mxu0
        %v1364 = vadd.f32 0.0, %v1363
        %v1365 = vpop.f32.mrf.mxu0
        %v1366 = vpop.f32.mrf.mxu0
        %v1367 = vadd.f32 0.0, %v1366
        %v1368 = vpop.f32.mrf.mxu0
        %1369 = vmatprep.mubr.bf16.mxu0 0
        %1370 = vmatmul.mubr.bf16.gmra.mxu0 %v1311
        %v1371 = vpop.f32.mrf.mxu0
        %v1372 = vadd.f32 0.0, %v1371
        %v1373 = vpop.f32.mrf.mxu0
        %v1374 = vpop.f32.mrf.mxu0
        %v1375 = vadd.f32 0.0, %v1374
        %v1376 = vpop.f32.mrf.mxu0
        %1377 = vdwg.mxu0
        %v1378 = vadd.f32 %v1263, %v1348
        %v1379 = vadd.f32 %v1264, %v1351
        %v1380 = vadd.f32 %v1265, %v1356
        %v1381 = vadd.f32 %v1266, %v1359
        %v1382 = vadd.f32 %v1267, %v1364
        %v1383 = vadd.f32 %v1268, %v1367
        %v1384 = vadd.f32 %v1269, %v1372
        %v1385 = vadd.f32 %v1270, %v1375
        %v1386 = vld [vmem:[%s1271 + $0x1] sm:$0xff]
        %v1387 = vld [vmem:[%s1271 + $0x11] sm:$0xff]
        %v1388 = vld [vmem:[%s1271 + $0x21] sm:$0xff]
        %v1389 = vld [vmem:[%s1271 + $0x31] sm:$0xff]
        %v1390 = vld [vmem:[%s1271 + $0x41] sm:$0xff]
        %v1391 = vld [vmem:[%s1271 + $0x51] sm:$0xff]
        %v1392 = vld [vmem:[%s1271 + $0x61] sm:$0xff]
        %v1393 = vld [vmem:[%s1271 + $0x71] sm:$0xff]
        %v1394 = vpack.c.bf16 %v1387, %v1386
        %v1395 = vpack.c.bf16 %v1389, %v1388
        %v1396 = vpack.c.bf16 %v1391, %v1390
        %v1397 = vpack.c.bf16 %v1393, %v1392
        %s1398 = scalar_lea.vmem [#allocation6], 112
        %v1399 = vld [vmem:[%s1398] sm:$0xf]
        %v1400 = vld [vmem:[%s1398 + $0x4] sm:$0xf]
        %v1401 = vld [vmem:[%s1398 + $0x8] sm:$0xf]
        %v1402 = vld [vmem:[%s1398 + $0xc] sm:$0xf]
        %v1407 = vunpack.c.l.b16 %v1399
        %v1408 = vunpack.c.l.b16 %v1400
        %v1409 = vunpack.c.l.b16 %v1401
        %v1410 = vunpack.c.l.b16 %v1402
        %v1411 = vpack.c.b16 %v1408, %v1407
        %v1412 = vpack.c.b16 %v1410, %v1409
        %v1416 = vsel %vm573, %v1394, 0
        %v1419 = vsel %vm573, %v1395, 0
        %v1422 = vsel %vm573, %v1396, 0
        %v1425 = vsel %vm573, %v1397, 0
        %1427 = vmatprep.subr.bf16.mxu0 0
        %1428 = vmatpush1.bf16.msra.mxu0 0
        %1429 = vmatprep.subr.bf16.mxu0 0
        %1430 = vmatpush1.bf16.msra.mxu0 0
        %1431 = vmatprep.subr.bf16.mxu0 0
        %1432 = vmatpush1.bf16.msra.mxu0 0
        %1433 = vmatprep.subr.bf16.mxu0 0
        %1434 = vmatpush1.bf16.msra.mxu0 0
        %1435 = vmatprep.subr.bf16.mxu0 0
        %1436 = vmatpush1.bf16.msra.mxu0 0
        %1437 = vmatprep.subr.bf16.mxu0 0
        %1438 = vmatpush1.bf16.msra.mxu0 0
        %1439 = vmatprep.subr.bf16.mxu0 0
        %1440 = vmatpush1.bf16.msra.mxu0 %v1412
        %1441 = vmatprep.subr.bf16.mxu0 0
        %1442 = vmatpush1.bf16.msra.mxu0 %v1411
        %1443 = vmatprep.subr.bf16.mxu0 0
        %1444 = vmatpush2.bf16.msra.mxu0 0
        %1445 = vmatprep.subr.bf16.mxu0 0
        %1446 = vmatpush2.bf16.msra.mxu0 0
        %1447 = vmatprep.subr.bf16.mxu0 0
        %1448 = vmatpush2.bf16.msra.mxu0 0
        %1449 = vmatprep.subr.bf16.mxu0 0
        %1450 = vmatpush2.bf16.msra.mxu0 0
        %1451 = vmatprep.subr.bf16.mxu0 0
        %1452 = vmatpush2.bf16.msra.mxu0 0
        %1453 = vmatprep.subr.bf16.mxu0 0
        %1454 = vmatpush2.bf16.msra.mxu0 0
        %1455 = vmatprep.subr.bf16.mxu0 0
        %1456 = vmatpush2.bf16.msra.mxu0 0
        %1457 = vmatprep.subr.bf16.mxu0 0
        %1458 = vmatpush2.bf16.msra.mxu0 0
        %1459 = vmatprep.mubr.bf16.mxu0 0
        %1460 = vmatmul.mubr.bf16.gmra.mxu0 %v1416
        %v1461 = vpop.f32.mrf.mxu0
        %v1462 = vadd.f32 0.0, %v1461
        %v1463 = vpop.f32.mrf.mxu0
        %v1464 = vpop.f32.mrf.mxu0
        %v1465 = vadd.f32 0.0, %v1464
        %v1466 = vpop.f32.mrf.mxu0
        %1467 = vmatprep.mubr.bf16.mxu0 0
        %1468 = vmatmul.mubr.bf16.gmra.mxu0 %v1419
        %v1469 = vpop.f32.mrf.mxu0
        %v1470 = vadd.f32 0.0, %v1469
        %v1471 = vpop.f32.mrf.mxu0
        %v1472 = vpop.f32.mrf.mxu0
        %v1473 = vadd.f32 0.0, %v1472
        %v1474 = vpop.f32.mrf.mxu0
        %1475 = vmatprep.mubr.bf16.mxu0 0
        %1476 = vmatmul.mubr.bf16.gmra.mxu0 %v1422
        %v1477 = vpop.f32.mrf.mxu0
        %v1478 = vadd.f32 0.0, %v1477
        %v1479 = vpop.f32.mrf.mxu0
        %v1480 = vpop.f32.mrf.mxu0
        %v1481 = vadd.f32 0.0, %v1480
        %v1482 = vpop.f32.mrf.mxu0
        %1483 = vmatprep.mubr.bf16.mxu0 0
        %1484 = vmatmul.mubr.bf16.gmra.mxu0 %v1425
        %v1485 = vpop.f32.mrf.mxu0
        %v1486 = vadd.f32 0.0, %v1485
        %v1487 = vpop.f32.mrf.mxu0
        %v1488 = vpop.f32.mrf.mxu0
        %v1489 = vadd.f32 0.0, %v1488
        %v1490 = vpop.f32.mrf.mxu0
        %1491 = vdwg.mxu0
        %v1492 = vadd.f32 %v1378, %v1462
        %v1493 = vadd.f32 %v1379, %v1465
        %v1494 = vadd.f32 %v1380, %v1470
        %v1495 = vadd.f32 %v1381, %v1473
        %v1496 = vadd.f32 %v1382, %v1478
        %v1497 = vadd.f32 %v1383, %v1481
        %v1498 = vadd.f32 %v1384, %v1486
        %v1499 = vadd.f32 %v1385, %v1489
        %v1500 = vld [vmem:[%s1271 + $0x2] sm:$0xff]
        %v1501 = vld [vmem:[%s1271 + $0x12] sm:$0xff]
        %v1502 = vld [vmem:[%s1271 + $0x22] sm:$0xff]
        %v1503 = vld [vmem:[%s1271 + $0x32] sm:$0xff]
        %v1504 = vld [vmem:[%s1271 + $0x42] sm:$0xff]
        %v1505 = vld [vmem:[%s1271 + $0x52] sm:$0xff]
        %v1506 = vld [vmem:[%s1271 + $0x62] sm:$0xff]
        %v1507 = vld [vmem:[%s1271 + $0x72] sm:$0xff]
        %v1508 = vpack.c.bf16 %v1501, %v1500
        %v1509 = vpack.c.bf16 %v1503, %v1502
        %v1510 = vpack.c.bf16 %v1505, %v1504
        %v1511 = vpack.c.bf16 %v1507, %v1506
        %s1512 = scalar_lea.vmem [#allocation6], 128
        %v1513 = vld [vmem:[%s1512] sm:$0xf]
        %v1514 = vld [vmem:[%s1512 + $0x4] sm:$0xf]
        %v1515 = vld [vmem:[%s1512 + $0x8] sm:$0xf]
        %v1516 = vld [vmem:[%s1512 + $0xc] sm:$0xf]
        %v1521 = vunpack.c.l.b16 %v1513
        %v1522 = vunpack.c.l.b16 %v1514
        %v1523 = vunpack.c.l.b16 %v1515
        %v1524 = vunpack.c.l.b16 %v1516
        %v1525 = vpack.c.b16 %v1522, %v1521
        %v1526 = vpack.c.b16 %v1524, %v1523
        %v1530 = vsel %vm573, %v1508, 0
        %v1533 = vsel %vm573, %v1509, 0
        %v1536 = vsel %vm573, %v1510, 0
        %v1539 = vsel %vm573, %v1511, 0
        %1541 = vmatprep.subr.bf16.mxu0 0
        %1542 = vmatpush1.bf16.msra.mxu0 0
        %1543 = vmatprep.subr.bf16.mxu0 0
        %1544 = vmatpush1.bf16.msra.mxu0 0
        %1545 = vmatprep.subr.bf16.mxu0 0
        %1546 = vmatpush1.bf16.msra.mxu0 0
        %1547 = vmatprep.subr.bf16.mxu0 0
        %1548 = vmatpush1.bf16.msra.mxu0 0
        %1549 = vmatprep.subr.bf16.mxu0 0
        %1550 = vmatpush1.bf16.msra.mxu0 0
        %1551 = vmatprep.subr.bf16.mxu0 0
        %1552 = vmatpush1.bf16.msra.mxu0 0
        %1553 = vmatprep.subr.bf16.mxu0 0
        %1554 = vmatpush1.bf16.msra.mxu0 %v1526
        %1555 = vmatprep.subr.bf16.mxu0 0
        %1556 = vmatpush1.bf16.msra.mxu0 %v1525
        %1557 = vmatprep.subr.bf16.mxu0 0
        %1558 = vmatpush2.bf16.msra.mxu0 0
        %1559 = vmatprep.subr.bf16.mxu0 0
        %1560 = vmatpush2.bf16.msra.mxu0 0
        %1561 = vmatprep.subr.bf16.mxu0 0
        %1562 = vmatpush2.bf16.msra.mxu0 0
        %1563 = vmatprep.subr.bf16.mxu0 0
        %1564 = vmatpush2.bf16.msra.mxu0 0
        %1565 = vmatprep.subr.bf16.mxu0 0
        %1566 = vmatpush2.bf16.msra.mxu0 0
        %1567 = vmatprep.subr.bf16.mxu0 0
        %1568 = vmatpush2.bf16.msra.mxu0 0
        %1569 = vmatprep.subr.bf16.mxu0 0
        %1570 = vmatpush2.bf16.msra.mxu0 0
        %1571 = vmatprep.subr.bf16.mxu0 0
        %1572 = vmatpush2.bf16.msra.mxu0 0
        %1573 = vmatprep.mubr.bf16.mxu0 0
        %1574 = vmatmul.mubr.bf16.gmra.mxu0 %v1530
        %v1575 = vpop.f32.mrf.mxu0
        %v1576 = vadd.f32 0.0, %v1575
        %v1577 = vpop.f32.mrf.mxu0
        %v1578 = vpop.f32.mrf.mxu0
        %v1579 = vadd.f32 0.0, %v1578
        %v1580 = vpop.f32.mrf.mxu0
        %1581 = vmatprep.mubr.bf16.mxu0 0
        %1582 = vmatmul.mubr.bf16.gmra.mxu0 %v1533
        %v1583 = vpop.f32.mrf.mxu0
        %v1584 = vadd.f32 0.0, %v1583
        %v1585 = vpop.f32.mrf.mxu0
        %v1586 = vpop.f32.mrf.mxu0
        %v1587 = vadd.f32 0.0, %v1586
        %v1588 = vpop.f32.mrf.mxu0
        %1589 = vmatprep.mubr.bf16.mxu0 0
        %1590 = vmatmul.mubr.bf16.gmra.mxu0 %v1536
        %v1591 = vpop.f32.mrf.mxu0
        %v1592 = vadd.f32 0.0, %v1591
        %v1593 = vpop.f32.mrf.mxu0
        %v1594 = vpop.f32.mrf.mxu0
        %v1595 = vadd.f32 0.0, %v1594
        %v1596 = vpop.f32.mrf.mxu0
        %1597 = vmatprep.mubr.bf16.mxu0 0
        %1598 = vmatmul.mubr.bf16.gmra.mxu0 %v1539
        %v1599 = vpop.f32.mrf.mxu0
        %v1600 = vadd.f32 0.0, %v1599
        %v1601 = vpop.f32.mrf.mxu0
        %v1602 = vpop.f32.mrf.mxu0
        %v1603 = vadd.f32 0.0, %v1602
        %v1604 = vpop.f32.mrf.mxu0
        %1605 = vdwg.mxu0
        %v1606 = vadd.f32 %v1492, %v1576
        %v1607 = vadd.f32 %v1493, %v1579
        %v1608 = vadd.f32 %v1494, %v1584
        %v1609 = vadd.f32 %v1495, %v1587
        %v1610 = vadd.f32 %v1496, %v1592
        %v1611 = vadd.f32 %v1497, %v1595
        %v1612 = vadd.f32 %v1498, %v1600
        %v1613 = vadd.f32 %v1499, %v1603
        %v1614 = vld [vmem:[%s5] sm:$0x1]
        %v1616 = vlaneseq
        %v1617 = vshrl.u32 %v1616, 7
        %v1618 = vsub.s32 0, %v1617
        %v1619 = vrot.slane %v1614, %v1618
        %v1621 = vmul.f32 %v1606, %v1619
        %v1622 = vmul.f32 %v1607, %v1619
        %v1623 = vmul.f32 %v1608, %v1619
        %v1624 = vmul.f32 %v1609, %v1619
        %v1625 = vmul.f32 %v1610, %v1619
        %v1626 = vmul.f32 %v1611, %v1619
        %v1627 = vmul.f32 %v1612, %v1619
        %v1628 = vmul.f32 %v1613, %v1619
        %v1629 = vld [vmem:[%s6] sm:$0x1]
        %v1631 = vlaneseq
        %v1632 = vshrl.u32 %v1631, 7
        %v1633 = vsub.s32 0, %v1632
        %v1634 = vrot.slane %v1629, %v1633
        %v1636 = vadd.f32 %v1621, %v1634
        %v1637 = vadd.f32 %v1622, %v1634
        %v1638 = vadd.f32 %v1623, %v1634
        %v1639 = vadd.f32 %v1624, %v1634
        %v1640 = vadd.f32 %v1625, %v1634
        %v1641 = vadd.f32 %v1626, %v1634
        %v1642 = vadd.f32 %v1627, %v1634
        %v1643 = vadd.f32 %v1628, %v1634
        %v1644 = vmax.f32 %v1636, 0.0
        %v1645 = vmax.f32 %v1637, 0.0
        %v1646 = vmax.f32 %v1638, 0.0
        %v1647 = vmax.f32 %v1639, 0.0
        %v1648 = vmax.f32 %v1640, 0.0
        %v1649 = vmax.f32 %v1641, 0.0
        %v1650 = vmax.f32 %v1642, 0.0
        %v1651 = vmax.f32 %v1643, 0.0
        %v1652 = vpack.c.bf16 %v1645, %v1644
        %v1653 = vpack.c.bf16 %v1647, %v1646
        %v1654 = vpack.c.bf16 %v1649, %v1648
        %v1655 = vpack.c.bf16 %v1651, %v1650
        %v1656 = vld [vmem:[%s7] sm:$0xf]
        %v1657 = vld [vmem:[%s7 + $0x4] sm:$0xf]
        %v1658 = vld [vmem:[%s7 + $0x8] sm:$0xf]
        %v1659 = vld [vmem:[%s7 + $0xc] sm:$0xf]
        %v1664 = vunpack.c.l.b16 %v1656
        %v1665 = vunpack.c.l.b16 %v1657
        %v1666 = vunpack.c.l.b16 %v1658
        %v1667 = vunpack.c.l.b16 %v1659
        %v1668 = vpack.c.b16 %v1665, %v1664
        %v1669 = vpack.c.b16 %v1667, %v1666
        %v1673 = vsel %vm573, %v1652, 0
        %v1676 = vsel %vm573, %v1653, 0
        %v1679 = vsel %vm573, %v1654, 0
        %v1682 = vsel %vm573, %v1655, 0
        %1684 = vmatprep.subr.bf16.mxu0 0
        %1685 = vmatpush1.bf16.msra.mxu0 0
        %1686 = vmatprep.subr.bf16.mxu0 0
        %1687 = vmatpush1.bf16.msra.mxu0 0
        %1688 = vmatprep.subr.bf16.mxu0 0
        %1689 = vmatpush1.bf16.msra.mxu0 0
        %1690 = vmatprep.subr.bf16.mxu0 0
        %1691 = vmatpush1.bf16.msra.mxu0 0
        %1692 = vmatprep.subr.bf16.mxu0 0
        %1693 = vmatpush1.bf16.msra.mxu0 0
        %1694 = vmatprep.subr.bf16.mxu0 0
        %1695 = vmatpush1.bf16.msra.mxu0 0
        %1696 = vmatprep.subr.bf16.mxu0 0
        %1697 = vmatpush1.bf16.msra.mxu0 %v1669
        %1698 = vmatprep.subr.bf16.mxu0 0
        %1699 = vmatpush1.bf16.msra.mxu0 %v1668
        %1700 = vmatprep.subr.bf16.mxu0 0
        %1701 = vmatpush2.bf16.msra.mxu0 0
        %1702 = vmatprep.subr.bf16.mxu0 0
        %1703 = vmatpush2.bf16.msra.mxu0 0
        %1704 = vmatprep.subr.bf16.mxu0 0
        %1705 = vmatpush2.bf16.msra.mxu0 0
        %1706 = vmatprep.subr.bf16.mxu0 0
        %1707 = vmatpush2.bf16.msra.mxu0 0
        %1708 = vmatprep.subr.bf16.mxu0 0
        %1709 = vmatpush2.bf16.msra.mxu0 0
        %1710 = vmatprep.subr.bf16.mxu0 0
        %1711 = vmatpush2.bf16.msra.mxu0 0
        %1712 = vmatprep.subr.bf16.mxu0 0
        %1713 = vmatpush2.bf16.msra.mxu0 0
        %1714 = vmatprep.subr.bf16.mxu0 0
        %1715 = vmatpush2.bf16.msra.mxu0 0
        %1716 = vmatprep.mubr.bf16.mxu0 0
        %1717 = vmatmul.mubr.bf16.gmra.mxu0 %v1673
        %v1718 = vpop.f32.mrf.mxu0
        %v1719 = vadd.f32 0.0, %v1718
        %v1720 = vpop.f32.mrf.mxu0
        %v1721 = vpop.f32.mrf.mxu0
        %v1722 = vadd.f32 0.0, %v1721
        %v1723 = vpop.f32.mrf.mxu0
        %1724 = vmatprep.mubr.bf16.mxu0 0
        %1725 = vmatmul.mubr.bf16.gmra.mxu0 %v1676
        %v1726 = vpop.f32.mrf.mxu0
        %v1727 = vadd.f32 0.0, %v1726
        %v1728 = vpop.f32.mrf.mxu0
        %v1729 = vpop.f32.mrf.mxu0
        %v1730 = vadd.f32 0.0, %v1729
        %v1731 = vpop.f32.mrf.mxu0
        %1732 = vmatprep.mubr.bf16.mxu0 0
        %1733 = vmatmul.mubr.bf16.gmra.mxu0 %v1679
        %v1734 = vpop.f32.mrf.mxu0
        %v1735 = vadd.f32 0.0, %v1734
        %v1736 = vpop.f32.mrf.mxu0
        %v1737 = vpop.f32.mrf.mxu0
        %v1738 = vadd.f32 0.0, %v1737
        %v1739 = vpop.f32.mrf.mxu0
        %1740 = vmatprep.mubr.bf16.mxu0 0
        %1741 = vmatmul.mubr.bf16.gmra.mxu0 %v1682
        %v1742 = vpop.f32.mrf.mxu0
        %v1743 = vadd.f32 0.0, %v1742
        %v1744 = vpop.f32.mrf.mxu0
        %v1745 = vpop.f32.mrf.mxu0
        %v1746 = vadd.f32 0.0, %v1745
        %v1747 = vpop.f32.mrf.mxu0
        %1748 = vdwg.mxu0
        %v1749 = vld [vmem:[%s8] sm:$0x1]
        %v1751 = vlaneseq
        %v1752 = vshrl.u32 %v1751, 7
        %v1753 = vsub.s32 0, %v1752
        %v1754 = vrot.slane %v1749, %v1753
        %v1756 = vmul.f32 %v1719, %v1754
        %v1757 = vmul.f32 %v1722, %v1754
        %v1758 = vmul.f32 %v1727, %v1754
        %v1759 = vmul.f32 %v1730, %v1754
        %v1760 = vmul.f32 %v1735, %v1754
        %v1761 = vmul.f32 %v1738, %v1754
        %v1762 = vmul.f32 %v1743, %v1754
        %v1763 = vmul.f32 %v1746, %v1754
        %v1764 = vld [vmem:[%s9] sm:$0x1]
        %v1766 = vlaneseq
        %v1767 = vshrl.u32 %v1766, 7
        %v1768 = vsub.s32 0, %v1767
        %v1769 = vrot.slane %v1764, %v1768
        %v1771 = vadd.f32 %v1756, %v1769
        %v1772 = vadd.f32 %v1757, %v1769
        %v1773 = vadd.f32 %v1758, %v1769
        %v1774 = vadd.f32 %v1759, %v1769
        %v1775 = vadd.f32 %v1760, %v1769
        %v1776 = vadd.f32 %v1761, %v1769
        %v1777 = vadd.f32 %v1762, %v1769
        %v1778 = vadd.f32 %v1763, %v1769
        %v1779 = vadd.f32 %v1771, %v394
        %v1780 = vadd.f32 %v1772, %v395
        %v1781 = vadd.f32 %v1773, %v396
        %v1782 = vadd.f32 %v1774, %v397
        %v1783 = vadd.f32 %v1775, %v398
        %v1784 = vadd.f32 %v1776, %v399
        %v1785 = vadd.f32 %v1777, %v400
        %v1786 = vadd.f32 %v1778, %v401
        %v1787 = vmax.f32 %v1779, 0.0
        %v1788 = vmax.f32 %v1780, 0.0
        %v1789 = vmax.f32 %v1781, 0.0
        %v1790 = vmax.f32 %v1782, 0.0
        %v1791 = vmax.f32 %v1783, 0.0
        %v1792 = vmax.f32 %v1784, 0.0
        %v1793 = vmax.f32 %v1785, 0.0
        %v1794 = vmax.f32 %v1786, 0.0
        %1795 = vst [vmem:[%s392] sm:$0xff] %v1787
        %1796 = vst [vmem:[%s392 + $0x8] sm:$0xff] %v1788
        %1797 = vst [vmem:[%s392 + $0x10] sm:$0xff] %v1789
        %1798 = vst [vmem:[%s392 + $0x18] sm:$0xff] %v1790
        %1799 = vst [vmem:[%s392 + $0x20] sm:$0xff] %v1791
        %1800 = vst [vmem:[%s392 + $0x28] sm:$0xff] %v1792
        %1801 = vst [vmem:[%s392 + $0x30] sm:$0xff] %v1793
        %1802 = vst [vmem:[%s392 + $0x38] sm:$0xff] %v1794
        %s1803 = sand.u32 %s251, 1
        %s1804 = scalar_lea.sflag [#allocation5], %s1803
        %s1805 = sand.u32 %s251, 1
        %s1806 = smul.addr %s1805, 64
        %s1807 = scalar_lea.vmem [#allocation8], %s1806
        // Predicated region
        $region69: #{tpu_custom_call.1} parent=59 // pred_check
          %p1808 = pneg %p261
        $region70: #{tpu_custom_call.1} parent=59 // pred_check_branch
          %1810 = sbr.rel (%p1808) target = $region72
        $region71: #{tpu_custom_call.1} parent=59 // pred_region
          %s1812 = ssub.s32 1024, 1024
          %1813 = vsyncadd %s1804, %s1812
          %s1814 = smul.addr %s28, 8
          %s1815 = smul.addr %s1814, 128
          %s1816 = scalar_lea.hbm %s10, %s1815
          %s1817 = sshll.u32 %s1807, 4
          %s1818 = int_to_ptr.vmem [resolvable:$true] %s1817
          %1823 = dma.vmem_to_hbm [thread:$0]  %s1818, 1024, %s1816, %s1804, 128, 128, 8
        $region72: #{tpu_custom_call.1} parent=59 // pred_fallthru
          _
      $region60: #{tpu_custom_call.1} parent=5 // pred_fallthru
        _
      %p1824 = scmp.le.s32.totalorder 2, %s23
      // Predicated region
      $region73: #{tpu_custom_call.1} parent=5 // pred_check
        %p1825 = pneg %p1824
      $region74: #{tpu_custom_call.1} parent=5 // pred_check_branch
        %1827 = sbr.rel (%p1825) target = $region76
      $region75: #{tpu_custom_call.1} parent=5 // pred_region
        %s1828 = ssub.s32 %s23, 2
        // Predicated region
        $region77: #{tpu_custom_call.1} parent=75 // pred_check
          %p1829 = pneg %p267
        $region78: #{tpu_custom_call.1} parent=75 // pred_check_branch
          %1831 = sbr.rel (%p1829) target = $region80
        $region79: #{tpu_custom_call.1} parent=75 // pred_region
          %s1832 = sand.u32 %s252, 1
          %s1833 = scalar_lea.sflag [#allocation5], %s1832
          %s1834 = sand.u32 %s252, 1
          %s1835 = smul.addr %s1834, 64
          %s1836 = scalar_lea.vmem [#allocation8], %s1835
          %1837 = dma.done %s1833, 1024
        $region80: #{tpu_custom_call.1} parent=75 // pred_fallthru
          _
      $region76: #{tpu_custom_call.1} parent=5 // pred_fallthru
        _
    $region6: #{tpu_custom_call.1} parent=1 // loop_footer
      %s27 = sadd.s32 1, %s23
    $region7: #{tpu_custom_call.1} parent=1 // loop_footer_branch
      %22 = sbr.rel target = $region3
    $region8: #{tpu_custom_call.1} parent=1 // loop_exit
      _
    %1838 = vsyncpa [#allocation4], 1
    %s1839 = scalar_lea.sflag [#allocation4], 1
    %1840 = vsyncpa %s1839, 1
    %1841 = vsyncpa [#allocation7], 1
    %1842 = vsyncpa [#allocation5], 1
    %s1843 = scalar_lea.sflag [#allocation5], 1
    %1844 = vsyncpa %s1843, 1

</llo_original>
